<compile_context>
chip_gen: v7x
topology: tpu7x:2x2x1
jax: 0.10.0
libtpu: 0.0.40
codegen_flags: <defaults>
</compile_context>

<pallas_src>
import functools

import jax
import jax.numpy as jnp
from jax.experimental import pallas as pl
from jax.experimental.pallas import tpu as pltpu


def _round_up(n, m):
    return ((n + m - 1) // m) * m


def _has_bf16_vpu():
    """bf16 VALU exists on v6e/v7x; v5e (and older) lack it."""
    try:
        kind = jax.devices()[0].device_kind.lower()
    except Exception:  # pragma: no cover - defensive
        return False
    return ("v6" in kind) or ("v7" in kind)


def _mlp_kernel(x_ref, w1_ref, w2_ref, b2_ref, w3_ref, b3_ref, o_ref, *,
                bf16_epilogue):
    # x_ref:  [F+1, Bt] bf16 (last row = ones)
    # w1_ref: [H1, F+1] bf16 (last column = b1)  -> bias folded into the MXU.
    h1 = jnp.dot(w1_ref[...], x_ref[...],
                 preferred_element_type=jnp.float32)          # [H1, Bt] f32

    if bf16_epilogue:
        # v6e/v7x: ReLU on packed bf16 vregs (2 rows/vreg), fuses the cast.
        h1b = jnp.maximum(h1.astype(w2_ref.dtype), 0)
    else:
        # v5e: no bf16 VPU -> f32 ReLU, then cast for the layer-2 MXU operand.
        h1b = jnp.maximum(h1, 0.0).astype(w2_ref.dtype)       # [H1, Bt] bf16

    # Layer 2 on the MXU (bf16 operands, f32 accumulate); bias/ReLU in f32.
    h2 = jnp.dot(w2_ref[...], h1b, preferred_element_type=jnp.float32)
    h2 = jnp.maximum(h2 + b2_ref[...], 0.0)                   # [H2, Bt] f32

    # Layer 3 (out_features == 1): weighted sublane reduction on VPU/XLU,
    # result is already lane-dense (1, Bt).
    out = jnp.sum(h2 * w3_ref[...], axis=0, keepdims=True) + b3_ref[0]
    o_ref[...] = out.astype(o_ref.dtype)                      # [1, Bt]


def ahaab_atom_classifier_pkd(x, params, *, block_b=None,
                              compute_dtype=jnp.bfloat16,
                              bf16_epilogue=None):
    """Fused forward pass of AhaabAtomClassifierPKD.

    x:      [B, F] float32
    params: PyTorch nn.Linear layout:
            w1 [H1, F], b1 [H1], w2 [H2, H1], b2 [H2], w3 [1, H2], b3 [1]
    """
    B, F = x.shape
    w1, b1 = params["w1"], params["b1"]
    w2, b2 = params["w2"], params["b2"]
    w3, b3 = params["w3"], params["b3"]
    H1 = w1.shape[0]
    H2 = w2.shape[0]

    if bf16_epilogue is None:
        bf16_epilogue = _has_bf16_vpu()

    # --- batch tile selection -------------------------------------------
    # * 128-lane multiples (lane-dense stores, full vregs).
    # * default 1024 to amortize the ~0.35us per-grid-step overhead; f32
    #   intermediates at 1024 are ~3 MiB -> fine under every scoped-VMEM
    #   default (v5e 16 MiB included).
    # * cap so dual-TC parts (v7x) get >= 2 grid blocks when B >= 256.
    if block_b is None:
        block_b = 1024
    block_b = max(128, _round_up(block_b, 128))
    if B >= 256:
        block_b = min(block_b, _round_up(pl.cdiv(B, 2), 128))
    block_b = min(block_b, _round_up(B, 128))
    num_blocks = pl.cdiv(B, block_b)
    b_pad = num_blocks * block_b

    # --- wrapper-side layout plumbing (fuses into the bf16 cast) ---------
    x_p = x if b_pad == B else jnp.pad(x, ((0, b_pad - B), (0, 0)))
    # Batch on lanes + ones row so b1 rides the layer-1 matmul.
    x_t = jnp.concatenate(
        [x_p.T, jnp.ones((1, b_pad), x_p.dtype)], axis=0
    ).astype(compute_dtype)                                   # [F+1, b_pad]
    w1a = jnp.concatenate(
        [w1, b1.reshape(H1, 1)], axis=1
    ).astype(compute_dtype)                                   # [H1, F+1]
    w2c = w2.astype(compute_dtype)                            # [H2, H1]
    # Elementwise math stays f32 (required on v5e: no bf16 VPU).
    b2c = b2.reshape(H2, 1).astype(jnp.float32)
    w3c = w3.reshape(H2, 1).astype(jnp.float32)
    b3s = b3.reshape(1).astype(jnp.float32)                   # scalar -> SMEM

    kernel = functools.partial(_mlp_kernel, bf16_epilogue=bf16_epilogue)

    out_row = pl.pallas_call(
        kernel,
        out_shape=jax.ShapeDtypeStruct((1, b_pad), jnp.float32),
        grid_spec=pltpu.PrefetchScalarGridSpec(
            num_scalar_prefetch=0,
            grid=(num_blocks,),
            in_specs=[
                # x tiled over batch (lane axis)
                pl.BlockSpec((F + 1, block_b), lambda i: (0, i)),
                # weights / biases resident, same block every step
                pl.BlockSpec((H1, F + 1), lambda i: (0, 0)),
                pl.BlockSpec((H2, H1), lambda i: (0, 0)),
                pl.BlockSpec((H2, 1), lambda i: (0, 0)),
                pl.BlockSpec((H2, 1), lambda i: (0, 0)),
                # b3 scalar lives in SMEM (avoids a padded (1,1) VMEM tile)
                pl.BlockSpec(memory_space=pltpu.MemorySpace.SMEM),
            ],
            # Lane-dense output row; wrapper reshapes to (B, 1).
            out_specs=pl.BlockSpec((1, block_b), lambda i: (0, i)),
        ),
        compiler_params=pltpu.CompilerParams(
            dimension_semantics=("parallel",),
        ),
    )(x_t, w1a, w2c, b2c, w3c, b3s)

    return out_row[0, :B].reshape(B, 1).astype(x.dtype)


def init_params(key, feature_size, hidden_layer1=512, hidden_layer2=256):
    """Deterministic synthetic parameters (PyTorch nn.Linear uniform init),
    stored in PyTorch layout [out_features, in_features]."""
    ks = jax.random.split(key, 6)

    def linear(kw, kb, fan_in, fan_out):
        bound = fan_in ** -0.5
        w = jax.random.uniform(kw, (fan_out, fan_in), jnp.float32, -bound, bound)
        b = jax.random.uniform(kb, (fan_out,), jnp.float32, -bound, bound)
        return w, b

    w1, b1 = linear(ks[0], ks[1], feature_size, hidden_layer1)
    w2, b2 = linear(ks[2], ks[3], hidden_layer1, hidden_layer2)
    w3, b3 = linear(ks[4], ks[5], hidden_layer2, 1)
    return {"w1": w1, "b1": b1, "w2": w2, "b2": b2, "w3": w3, "b3": b3}


def _reference_f32(x, p):
    h1 = jnp.maximum(x @ p["w1"].T + p["b1"], 0.0)
    h2 = jnp.maximum(h1 @ p["w2"].T + p["b2"], 0.0)
    return h2 @ p["w3"].T + p["b3"]


def _reference_mixed(x, p, compute_dtype=jnp.bfloat16):
    # Same mixed precision as the kernel: b1 folded into a bf16 layer-1 dot,
    # f32 accumulation, ReLU (order vs. bf16 cast is mathematically identical),
    # f32 layer-2 bias/ReLU, final layer as an f32 reduction.
    B = x.shape[0]
    H1 = p["w1"].shape[0]
    xa = jnp.concatenate([x, jnp.ones((B, 1), x.dtype)], axis=1)
    w1a = jnp.concatenate([p["w1"], p["b1"].reshape(H1, 1)], axis=1)
    h1 = jnp.dot(xa.astype(compute_dtype), w1a.astype(compute_dtype).T,
                 preferred_element_type=jnp.float32)
    h1 = jnp.maximum(h1, 0.0)
    h2 = jnp.dot(h1.astype(compute_dtype), p["w2"].astype(compute_dtype).T,
                 preferred_element_type=jnp.float32) + p["b2"]
    h2 = jnp.maximum(h2, 0.0)
    return jnp.sum(h2 * p["w3"], axis=-1, keepdims=True) + p["b3"]


if __name__ == "__main__":
    key = jax.random.PRNGKey(0)
    k_x, k_p = jax.random.split(key)

    batch = 8
    feature_size = 32  # small synthetic feature size
    x = jax.random.normal(k_x, (batch, feature_size), jnp.float32)
    params = init_params(k_p, feature_size, hidden_layer1=512, hidden_layer2=256)

    out = ahaab_atom_classifier_pkd(x, params)
    out = jax.block_until_ready(out)
    assert out.shape == (batch, 1), out.shape
    assert jnp.allclose(out, _reference_mixed(x, params), atol=2e-3, rtol=2e-3), \
        "mismatch vs mixed-precision reference"
    assert jnp.allclose(out, _reference_f32(x, params), atol=5e-2, rtol=5e-2), \
        "mismatch vs f32 reference"

    # Exercise the multi-block (tiled + padded) path as well.
    batch2 = 300
    x2 = jax.random.normal(k_x, (batch2, feature_size), jnp.float32)
    out2 = jax.block_until_ready(
        ahaab_atom_classifier_pkd(x2, params, block_b=128))
    assert out2.shape == (batch2, 1), out2.shape
    assert jnp.allclose(out2, _reference_mixed(x2, params), atol=2e-3, rtol=2e-3), \
        "mismatch vs mixed-precision reference (tiled path)"

    # Default tile selection (exercises the >=2-blocks-when-B>=256 cap).
    out3 = jax.block_until_ready(ahaab_atom_classifier_pkd(x2, params))
    assert out3.shape == (batch2, 1), out3.shape
    assert jnp.allclose(out3, _reference_mixed(x2, params), atol=2e-3, rtol=2e-3), \
        "mismatch vs mixed-precision reference (default-tile path)"

    print("KERNEL_OK")
</pallas_src>

<mosaic_0001>
module attributes {stable_mosaic.version = 11 : i64} {
  func.func @_mlp_kernel(%arg0: i32, %arg1: memref<33x128xbf16, #tpu.memory_space<vmem>>, %arg2: memref<512x33xbf16, #tpu.memory_space<vmem>>, %arg3: memref<256x512xbf16, #tpu.memory_space<vmem>>, %arg4: memref<256x1xf32, #tpu.memory_space<vmem>>, %arg5: memref<256x1xf32, #tpu.memory_space<vmem>>, %arg6: memref<1xf32, #tpu.memory_space<smem>>, %arg7: memref<1x128xf32, #tpu.memory_space<vmem>>) attributes {dimension_semantics = [#tpu.dimension_semantics<parallel>], iteration_bounds = array<i64: 1>, scalar_prefetch = 0 : i64, scratch_operands = 0 : i64, tpu.core_type = #tpu.core_type<tc>, window_params = [{transform_indices = @transform_0, window_bounds = array<i64: 33, 128>}, {pipeline_mode = #tpu.pipeline_mode<synchronous>, transform_indices = @transform_1, window_bounds = array<i64: 512, 33>}, {pipeline_mode = #tpu.pipeline_mode<synchronous>, transform_indices = @transform_2, window_bounds = array<i64: 256, 512>}, {pipeline_mode = #tpu.pipeline_mode<synchronous>, transform_indices = @transform_3, window_bounds = array<i64: 256, 1>}, {pipeline_mode = #tpu.pipeline_mode<synchronous>, transform_indices = @transform_4, window_bounds = array<i64: 256, 1>}, {transform_indices = @transform_5, window_bounds = array<i64: 1>}, {transform_indices = @transform_6, window_bounds = array<i64: 1, 128>}]} {
    %c0 = arith.constant 0 : index
    %c0_0 = arith.constant 0 : index
    %0 = vector.load %arg2[%c0, %c0_0] : memref<512x33xbf16, #tpu.memory_space<vmem>>, vector<512x33xbf16>
    %c0_1 = arith.constant 0 : index
    %c0_2 = arith.constant 0 : index
    %1 = vector.load %arg1[%c0_1, %c0_2] : memref<33x128xbf16, #tpu.memory_space<vmem>>, vector<33x128xbf16>
    %cst = arith.constant dense<0.000000e+00> : vector<512x128xf32>
    %2 = tpu.matmul %0, %1, %cst {dimension_numbers = #tpu.dot_dimension_numbers<[1], [0], [0], [1], [0, 0, 1, 1], [], []>} : vector<512x33xbf16>, vector<33x128xbf16>, vector<512x128xf32> -> vector<512x128xf32>
    %cst_3 = arith.constant 0.000000e+00 : f32
    %3 = vector.broadcast %cst_3 : f32 to vector<512x128xf32>
    %4 = arith.maximumf %2, %3 : vector<512x128xf32>
    %5 = arith.truncf %4 : vector<512x128xf32> to vector<512x128xbf16>
    %c0_4 = arith.constant 0 : index
    %c0_5 = arith.constant 0 : index
    %6 = vector.load %arg3[%c0_4, %c0_5] : memref<256x512xbf16, #tpu.memory_space<vmem>>, vector<256x512xbf16>
    %cst_6 = arith.constant dense<0.000000e+00> : vector<256x128xf32>
    %7 = tpu.matmul %6, %5, %cst_6 {dimension_numbers = #tpu.dot_dimension_numbers<[1], [0], [0], [1], [0, 0, 1, 1], [], []>} : vector<256x512xbf16>, vector<512x128xbf16>, vector<256x128xf32> -> vector<256x128xf32>
    %c0_7 = arith.constant 0 : index
    %c0_8 = arith.constant 0 : index
    %8 = vector.load %arg4[%c0_7, %c0_8] : memref<256x1xf32, #tpu.memory_space<vmem>>, vector<256x1xf32>
    %9 = vector.broadcast %8 : vector<256x1xf32> to vector<256x128xf32>
    %10 = arith.addf %7, %9 : vector<256x128xf32>
    %cst_9 = arith.constant 0.000000e+00 : f32
    %11 = vector.broadcast %cst_9 : f32 to vector<256x128xf32>
    %12 = arith.maximumf %10, %11 : vector<256x128xf32>
    %c0_10 = arith.constant 0 : index
    %c0_11 = arith.constant 0 : index
    %13 = vector.load %arg5[%c0_10, %c0_11] : memref<256x1xf32, #tpu.memory_space<vmem>>, vector<256x1xf32>
    %14 = vector.broadcast %13 : vector<256x1xf32> to vector<256x128xf32>
    %15 = arith.mulf %12, %14 : vector<256x128xf32>
    %cst_12 = arith.constant dense<0.000000e+00> : vector<128xf32>
    %16 = vector.multi_reduction <add>, %15, %cst_12 [0] : vector<256x128xf32> to vector<128xf32>
    %17 = vector.shape_cast %16 : vector<128xf32> to vector<1x128xf32>
    %c0_13 = arith.constant 0 : index
    %18 = memref.load %arg6[%c0_13] : memref<1xf32, #tpu.memory_space<smem>>
    %19 = vector.broadcast %18 : f32 to vector<1x128xf32>
    %20 = arith.addf %17, %19 : vector<1x128xf32>
    %c0_14 = arith.constant 0 : index
    %c0_15 = arith.constant 0 : index
    %21 = vector.load %arg7[%c0_14, %c0_15] : memref<1x128xf32, #tpu.memory_space<vmem>>, vector<1x128xf32>
    tpu.vector_store %arg7[%c0_14, %c0_15], %20 {strides = array<i32>} : memref<1x128xf32, #tpu.memory_space<vmem>>, vector<1x128xf32>,
    return
  }
  func.func @transform_0(%arg0: i32) -> (i32, i32) {
    %c0_i32 = arith.constant 0 : i32
    %c0_i32_0 = arith.constant 0 : i32
    return %c0_i32, %arg0 : i32, i32
  }
  func.func @transform_1(%arg0: i32) -> (i32, i32) {
    %c0_i32 = arith.constant 0 : i32
    %c0_i32_0 = arith.constant 0 : i32
    %c0_i32_1 = arith.constant 0 : i32
    return %c0_i32, %c0_i32_0 : i32, i32
  }
  func.func @transform_2(%arg0: i32) -> (i32, i32) {
    %c0_i32 = arith.constant 0 : i32
    %c0_i32_0 = arith.constant 0 : i32
    %c0_i32_1 = arith.constant 0 : i32
    return %c0_i32, %c0_i32_0 : i32, i32
  }
  func.func @transform_3(%arg0: i32) -> (i32, i32) {
    %c0_i32 = arith.constant 0 : i32
    %c0_i32_0 = arith.constant 0 : i32
    %c0_i32_1 = arith.constant 0 : i32
    return %c0_i32, %c0_i32_0 : i32, i32
  }
  func.func @transform_4(%arg0: i32) -> (i32, i32) {
    %c0_i32 = arith.constant 0 : i32
    %c0_i32_0 = arith.constant 0 : i32
    %c0_i32_1 = arith.constant 0 : i32
    return %c0_i32, %c0_i32_0 : i32, i32
  }
  func.func @transform_5(%arg0: i32) -> i32 {
    %c0_i32 = arith.constant 0 : i32
    %c0_i32_0 = arith.constant 0 : i32
    return %c0_i32 : i32
  }
  func.func @transform_6(%arg0: i32) -> (i32, i32) {
    %c0_i32 = arith.constant 0 : i32
    %c0_i32_0 = arith.constant 0 : i32
    return %c0_i32, %arg0 : i32, i32
  }
}

</mosaic_0001>

<llo_original>
// kernel: tpu_custom_call.1
$region0: #{tpu_custom_call.1}
  #allocation0 [shape = 'u32[]', space=smem, size = 0x4, offset = 0x4, fixed_abs, tag = 'smem constant byte address 0x4 - core index']
  #allocation1 [shape = 'u32[144,128]{1,0:T(1,128)}', space=vmem, size = 0x12000, scoped, tag = 'internal scratch']
  #allocation2 [shape = 'f32[1]{0:T(128)S(6)}', space=smem, size = 0x200, scoped, tag = 'scoped memory for tpu_custom_call.1']
  %s0 = inlined_call_operand.vmem [shape: bf16[33,128], index: 0, kind: input, shape index: {}]
  %s1 = inlined_call_operand.vmem [shape: bf16[512,33], index: 1, kind: input, shape index: {}]
  %s2 = inlined_call_operand.vmem [shape: bf16[256,512], index: 2, kind: input, shape index: {}]
  %s3 = inlined_call_operand.vmem [shape: f32[256,1], index: 3, kind: input, shape index: {}]
  %s4 = inlined_call_operand.vmem [shape: f32[256,1], index: 4, kind: input, shape index: {}]
  %s5 = inlined_call_operand.<no memory space> [shape: f32[1], index: 5, kind: input, shape index: {}]
  %s6 = inlined_call_operand.hbm [shape: f32[1,128], index: 6, kind: output, shape index: {}]
  %s7 = sld [smem:[#allocation0]]
  $region34: #{tpu_custom_call.1} parent=0
    _
  %s9 = ssub.s32 1, %s7
  %s10 = scalar_select 0, %s9, %s7
  %11 = sst [smem:[#allocation2]] %s5
  $region1: #{tpu_custom_call.1} parent=0
    #allocation3 [shape = 'u8[512]{0}', space=vmem, size = 0x400, scoped, tag = 'output window, operand 0, single buffered']
    #allocation4 [shape = 's32[1]{0}', space=sflag, size = 0x4, scoped, tag = 'scoped memory for tpu_custom_call.1']
    %12 = vsyncpa [#allocation4], 0
    // Predicated region
    $region2: #{tpu_custom_call.1} parent=1 // pred_check
      _
    $region3: #{tpu_custom_call.1} parent=1 // pred_check_branch
      %14 = sbr.rel (0) target = $region5
    $region4: #{tpu_custom_call.1} parent=1 // pred_region
      _
    $region5: #{tpu_custom_call.1} parent=1 // pred_fallthru
      _
    // Predicated region
    $region6: #{tpu_custom_call.1} parent=1 // pred_check
      _
    $region7: #{tpu_custom_call.1} parent=1 // pred_check_branch
      %16 = sbr.rel (0) target = $region9
    $region8: #{tpu_custom_call.1} parent=1 // pred_region
      _
    $region9: #{tpu_custom_call.1} parent=1 // pred_fallthru
      _
    // Predicated region
    $region10: #{tpu_custom_call.1} parent=1 // pred_check
      _
    $region11: #{tpu_custom_call.1} parent=1 // pred_check_branch
      %18 = sbr.rel (0) target = $region13
    $region12: #{tpu_custom_call.1} parent=1 // pred_region
      _
    $region13: #{tpu_custom_call.1} parent=1 // pred_fallthru
      _
    // Predicated region
    $region14: #{tpu_custom_call.1} parent=1 // pred_check
      _
    $region15: #{tpu_custom_call.1} parent=1 // pred_check_branch
      %20 = sbr.rel (0) target = $region17
    $region16: #{tpu_custom_call.1} parent=1 // pred_region
      _
    $region17: #{tpu_custom_call.1} parent=1 // pred_fallthru
      _
    // Predicated region
    $region18: #{tpu_custom_call.1} parent=1 // pred_check
      _
    $region19: #{tpu_custom_call.1} parent=1 // pred_check_branch
      %22 = sbr.rel (0) target = $region21
    $region20: #{tpu_custom_call.1} parent=1 // pred_region
      _
    $region21: #{tpu_custom_call.1} parent=1 // pred_fallthru
      _
    // Predicated region
    $region22: #{tpu_custom_call.1} parent=1 // pred_check
      _
    $region23: #{tpu_custom_call.1} parent=1 // pred_check_branch
      %24 = sbr.rel (0) target = $region25
    $region24: #{tpu_custom_call.1} parent=1 // pred_region
      _
    $region25: #{tpu_custom_call.1} parent=1 // pred_fallthru
      _
    %v26 = vld [vmem:[%s1] sm:$0xf]
    %v27 = vld [vmem:[%s1 + $0x4] sm:$0xf]
    %v28 = vld [vmem:[%s1 + $0x8] sm:$0xf]
    %v29 = vld [vmem:[%s1 + $0xc] sm:$0xf]
    %v30 = vld [vmem:[%s1 + $0x10] sm:$0xf]
    %v31 = vld [vmem:[%s1 + $0x14] sm:$0xf]
    %v32 = vld [vmem:[%s1 + $0x18] sm:$0xf]
    %v33 = vld [vmem:[%s1 + $0x1c] sm:$0xf]
    %v34 = vld [vmem:[%s1 + $0x20] sm:$0xf]
    %v35 = vld [vmem:[%s1 + $0x24] sm:$0xf]
    %v36 = vld [vmem:[%s1 + $0x28] sm:$0xf]
    %v37 = vld [vmem:[%s1 + $0x2c] sm:$0xf]
    %v38 = vld [vmem:[%s1 + $0x30] sm:$0xf]
    %v39 = vld [vmem:[%s1 + $0x34] sm:$0xf]
    %v40 = vld [vmem:[%s1 + $0x38] sm:$0xf]
    %v41 = vld [vmem:[%s1 + $0x3c] sm:$0xf]
    %v42 = vld [vmem:[%s1 + $0x40] sm:$0xf]
    %v43 = vld [vmem:[%s1 + $0x44] sm:$0xf]
    %v44 = vld [vmem:[%s1 + $0x48] sm:$0xf]
    %v45 = vld [vmem:[%s1 + $0x4c] sm:$0xf]
    %v46 = vld [vmem:[%s1 + $0x50] sm:$0xf]
    %v47 = vld [vmem:[%s1 + $0x54] sm:$0xf]
    %v48 = vld [vmem:[%s1 + $0x58] sm:$0xf]
    %v49 = vld [vmem:[%s1 + $0x5c] sm:$0xf]
    %v50 = vld [vmem:[%s1 + $0x60] sm:$0xf]
    %v51 = vld [vmem:[%s1 + $0x64] sm:$0xf]
    %v52 = vld [vmem:[%s1 + $0x68] sm:$0xf]
    %v53 = vld [vmem:[%s1 + $0x6c] sm:$0xf]
    %v54 = vld [vmem:[%s1 + $0x70] sm:$0xf]
    %v55 = vld [vmem:[%s1 + $0x74] sm:$0xf]
    %v56 = vld [vmem:[%s1 + $0x78] sm:$0xf]
    %v57 = vld [vmem:[%s1 + $0x7c] sm:$0xf]
    %v58 = vld [vmem:[%s1 + $0x80] sm:$0xf]
    %v59 = vld [vmem:[%s1 + $0x84] sm:$0xf]
    %v60 = vld [vmem:[%s1 + $0x88] sm:$0xf]
    %v61 = vld [vmem:[%s1 + $0x8c] sm:$0xf]
    %v62 = vld [vmem:[%s1 + $0x90] sm:$0xf]
    %v63 = vld [vmem:[%s1 + $0x94] sm:$0xf]
    %v64 = vld [vmem:[%s1 + $0x98] sm:$0xf]
    %v65 = vld [vmem:[%s1 + $0x9c] sm:$0xf]
    %v66 = vld [vmem:[%s1 + $0xa0] sm:$0xf]
    %v67 = vld [vmem:[%s1 + $0xa4] sm:$0xf]
    %v68 = vld [vmem:[%s1 + $0xa8] sm:$0xf]
    %v69 = vld [vmem:[%s1 + $0xac] sm:$0xf]
    %v70 = vld [vmem:[%s1 + $0xb0] sm:$0xf]
    %v71 = vld [vmem:[%s1 + $0xb4] sm:$0xf]
    %v72 = vld [vmem:[%s1 + $0xb8] sm:$0xf]
    %v73 = vld [vmem:[%s1 + $0xbc] sm:$0xf]
    %v74 = vld [vmem:[%s1 + $0xc0] sm:$0xf]
    %v75 = vld [vmem:[%s1 + $0xc4] sm:$0xf]
    %v76 = vld [vmem:[%s1 + $0xc8] sm:$0xf]
    %v77 = vld [vmem:[%s1 + $0xcc] sm:$0xf]
    %v78 = vld [vmem:[%s1 + $0xd0] sm:$0xf]
    %v79 = vld [vmem:[%s1 + $0xd4] sm:$0xf]
    %v80 = vld [vmem:[%s1 + $0xd8] sm:$0xf]
    %v81 = vld [vmem:[%s1 + $0xdc] sm:$0xf]
    %v82 = vld [vmem:[%s1 + $0xe0] sm:$0xf]
    %v83 = vld [vmem:[%s1 + $0xe4] sm:$0xf]
    %v84 = vld [vmem:[%s1 + $0xe8] sm:$0xf]
    %v85 = vld [vmem:[%s1 + $0xec] sm:$0xf]
    %v86 = vld [vmem:[%s1 + $0xf0] sm:$0xf]
    %v87 = vld [vmem:[%s1 + $0xf4] sm:$0xf]
    %v88 = vld [vmem:[%s1 + $0xf8] sm:$0xf]
    %v89 = vld [vmem:[%s1 + $0xfc] sm:$0xf]
    %v90 = vld [vmem:[%s0] sm:$0xf]
    %v91 = vld [vmem:[%s0 + $0x4] sm:$0xf]
    %v92 = vld [vmem:[%s0 + $0x8] sm:$0xf]
    %v93 = vld [vmem:[%s0 + $0xc] sm:$0xf]
    %v94 = vld [vmem:[%s0 + $0x10] sm:$0x1]
    %v159 = vunpack.c.l.b16 %v26
    %v160 = vunpack.c.l.b16 %v27
    %v161 = vunpack.c.l.b16 %v28
    %v162 = vunpack.c.l.b16 %v29
    %v163 = vunpack.c.l.b16 %v30
    %v164 = vunpack.c.l.b16 %v31
    %v165 = vunpack.c.l.b16 %v32
    %v166 = vunpack.c.l.b16 %v33
    %v167 = vunpack.c.l.b16 %v34
    %v168 = vunpack.c.l.b16 %v35
    %v169 = vunpack.c.l.b16 %v36
    %v170 = vunpack.c.l.b16 %v37
    %v171 = vunpack.c.l.b16 %v38
    %v172 = vunpack.c.l.b16 %v39
    %v173 = vunpack.c.l.b16 %v40
    %v174 = vunpack.c.l.b16 %v41
    %v175 = vunpack.c.l.b16 %v42
    %v176 = vunpack.c.l.b16 %v43
    %v177 = vunpack.c.l.b16 %v44
    %v178 = vunpack.c.l.b16 %v45
    %v179 = vunpack.c.l.b16 %v46
    %v180 = vunpack.c.l.b16 %v47
    %v181 = vunpack.c.l.b16 %v48
    %v182 = vunpack.c.l.b16 %v49
    %v183 = vunpack.c.l.b16 %v50
    %v184 = vunpack.c.l.b16 %v51
    %v185 = vunpack.c.l.b16 %v52
    %v186 = vunpack.c.l.b16 %v53
    %v187 = vunpack.c.l.b16 %v54
    %v188 = vunpack.c.l.b16 %v55
    %v189 = vunpack.c.l.b16 %v56
    %v190 = vunpack.c.l.b16 %v57
    %v191 = vunpack.c.l.b16 %v58
    %v192 = vunpack.c.l.b16 %v59
    %v193 = vunpack.c.l.b16 %v60
    %v194 = vunpack.c.l.b16 %v61
    %v195 = vunpack.c.l.b16 %v62
    %v196 = vunpack.c.l.b16 %v63
    %v197 = vunpack.c.l.b16 %v64
    %v198 = vunpack.c.l.b16 %v65
    %v199 = vunpack.c.l.b16 %v66
    %v200 = vunpack.c.l.b16 %v67
    %v201 = vunpack.c.l.b16 %v68
    %v202 = vunpack.c.l.b16 %v69
    %v203 = vunpack.c.l.b16 %v70
    %v204 = vunpack.c.l.b16 %v71
    %v205 = vunpack.c.l.b16 %v72
    %v206 = vunpack.c.l.b16 %v73
    %v207 = vunpack.c.l.b16 %v74
    %v208 = vunpack.c.l.b16 %v75
    %v209 = vunpack.c.l.b16 %v76
    %v210 = vunpack.c.l.b16 %v77
    %v211 = vunpack.c.l.b16 %v78
    %v212 = vunpack.c.l.b16 %v79
    %v213 = vunpack.c.l.b16 %v80
    %v214 = vunpack.c.l.b16 %v81
    %v215 = vunpack.c.l.b16 %v82
    %v216 = vunpack.c.l.b16 %v83
    %v217 = vunpack.c.l.b16 %v84
    %v218 = vunpack.c.l.b16 %v85
    %v219 = vunpack.c.l.b16 %v86
    %v220 = vunpack.c.l.b16 %v87
    %v221 = vunpack.c.l.b16 %v88
    %v222 = vunpack.c.l.b16 %v89
    %v223 = vpack.c.b16 %v160, %v159
    %v224 = vpack.c.b16 %v162, %v161
    %v225 = vpack.c.b16 %v164, %v163
    %v226 = vpack.c.b16 %v166, %v165
    %v227 = vpack.c.b16 %v168, %v167
    %v228 = vpack.c.b16 %v170, %v169
    %v229 = vpack.c.b16 %v172, %v171
    %v230 = vpack.c.b16 %v174, %v173
    %v231 = vpack.c.b16 %v176, %v175
    %v232 = vpack.c.b16 %v178, %v177
    %v233 = vpack.c.b16 %v180, %v179
    %v234 = vpack.c.b16 %v182, %v181
    %v235 = vpack.c.b16 %v184, %v183
    %v236 = vpack.c.b16 %v186, %v185
    %v237 = vpack.c.b16 %v188, %v187
    %v238 = vpack.c.b16 %v190, %v189
    %v239 = vpack.c.b16 %v192, %v191
    %v240 = vpack.c.b16 %v194, %v193
    %v241 = vpack.c.b16 %v196, %v195
    %v242 = vpack.c.b16 %v198, %v197
    %v243 = vpack.c.b16 %v200, %v199
    %v244 = vpack.c.b16 %v202, %v201
    %v245 = vpack.c.b16 %v204, %v203
    %v246 = vpack.c.b16 %v206, %v205
    %v247 = vpack.c.b16 %v208, %v207
    %v248 = vpack.c.b16 %v210, %v209
    %v249 = vpack.c.b16 %v212, %v211
    %v250 = vpack.c.b16 %v214, %v213
    %v251 = vpack.c.b16 %v216, %v215
    %v252 = vpack.c.b16 %v218, %v217
    %v253 = vpack.c.b16 %v220, %v219
    %v254 = vpack.c.b16 %v222, %v221
    %v260 = vunpack.c.l.b16 %v90
    %v261 = vunpack.c.l.b16 %v91
    %v262 = vunpack.c.l.b16 %v92
    %v263 = vunpack.c.l.b16 %v93
    %v264 = vunpack.c.l.b16 %v94
    %v265 = vpack.c.b16 %v261, %v260
    %v266 = vpack.c.b16 %v263, %v262
    %v267 = vpack.c.b16 %v264, %v264
    %vm270 = vcmask 269312
    %v272 = vsel %vm270, %v223, 0
    %v275 = vsel %vm270, %v224, 0
    %v278 = vsel %vm270, %v225, 0
    %v281 = vsel %vm270, %v226, 0
    %v284 = vsel %vm270, %v227, 0
    %v287 = vsel %vm270, %v228, 0
    %v290 = vsel %vm270, %v229, 0
    %v293 = vsel %vm270, %v230, 0
    %v296 = vsel %vm270, %v231, 0
    %v299 = vsel %vm270, %v232, 0
    %v302 = vsel %vm270, %v233, 0
    %v305 = vsel %vm270, %v234, 0
    %v308 = vsel %vm270, %v235, 0
    %v311 = vsel %vm270, %v236, 0
    %v314 = vsel %vm270, %v237, 0
    %v317 = vsel %vm270, %v238, 0
    %v320 = vsel %vm270, %v239, 0
    %v323 = vsel %vm270, %v240, 0
    %v326 = vsel %vm270, %v241, 0
    %v329 = vsel %vm270, %v242, 0
    %v332 = vsel %vm270, %v243, 0
    %v335 = vsel %vm270, %v244, 0
    %v338 = vsel %vm270, %v245, 0
    %v341 = vsel %vm270, %v246, 0
    %v344 = vsel %vm270, %v247, 0
    %v347 = vsel %vm270, %v248, 0
    %v350 = vsel %vm270, %v249, 0
    %v353 = vsel %vm270, %v250, 0
    %v356 = vsel %vm270, %v251, 0
    %v359 = vsel %vm270, %v252, 0
    %v362 = vsel %vm270, %v253, 0
    %v365 = vsel %vm270, %v254, 0
    %vm367 = vcmask 1040384
    %v368 = vsel 0, 4294967295, 65535
    %v369 = vsel %vm367, %v368, 0
    %v371 = vand.u32 %v267, %v369
    %373 = vmatprep.subr.bf16.mxu0 0
    %374 = vmatpush1.bf16.msra.mxu0 %v265
    %375 = vmatprep.subr.bf16.mxu0 0
    %376 = vmatpush1.bf16.msra.mxu0 %v266
    %377 = vmatprep.subr.bf16.mxu0 0
    %378 = vmatpush1.bf16.msra.mxu0 %v371
    %379 = vmatprep.subr.bf16.mxu0 0
    %380 = vmatpush1.bf16.msra.mxu0 0
    %381 = vmatprep.subr.bf16.mxu0 0
    %382 = vmatpush1.bf16.msra.mxu0 0
    %383 = vmatprep.subr.bf16.mxu0 0
    %384 = vmatpush1.bf16.msra.mxu0 0
    %385 = vmatprep.subr.bf16.mxu0 0
    %386 = vmatpush1.bf16.msra.mxu0 0
    %387 = vmatprep.subr.bf16.mxu0 0
    %388 = vmatpush1.bf16.msra.mxu0 0
    %389 = vmatprep.subr.bf16.mxu0 0
    %390 = vmatpush1.bf16.msra.mxu0 0
    %391 = vmatprep.subr.bf16.mxu0 0
    %392 = vmatpush1.bf16.msra.mxu0 0
    %393 = vmatprep.subr.bf16.mxu0 0
    %394 = vmatpush1.bf16.msra.mxu0 0
    %395 = vmatprep.subr.bf16.mxu0 0
    %396 = vmatpush1.bf16.msra.mxu0 0
    %397 = vmatprep.subr.bf16.mxu0 0
    %398 = vmatpush1.bf16.msra.mxu0 0
    %399 = vmatprep.subr.bf16.mxu0 0
    %400 = vmatpush1.bf16.msra.mxu0 0
    %401 = vmatprep.subr.bf16.mxu0 0
    %402 = vmatpush1.bf16.msra.mxu0 0
    %403 = vmatprep.subr.bf16.mxu0 0
    %404 = vmatpush1.bf16.msra.mxu0 0
    %405 = vmatprep.mubr.bf16.mxu0 0
    %406 = vmatmul.mubr.bf16.gmra.mrb[0].mxu0 %v272
    %v407 = vpop.f32.mrb[0].mxu0
    %v408 = vadd.f32 0.0, %v407
    %v409 = vpop.f32.mrb[0].mxu0
    %v410 = vpop.f32.mrb[0].mxu0
    %v411 = vadd.f32 0.0, %v410
    %v412 = vpop.f32.mrb[0].mxu0
    %413 = vmatprep.mubr.bf16.mxu0 0
    %414 = vmatmul.mubr.bf16.gmra.mrb[0].mxu0 %v275
    %v415 = vpop.f32.mrb[0].mxu0
    %v416 = vadd.f32 0.0, %v415
    %v417 = vpop.f32.mrb[0].mxu0
    %v418 = vpop.f32.mrb[0].mxu0
    %v419 = vadd.f32 0.0, %v418
    %v420 = vpop.f32.mrb[0].mxu0
    %421 = vmatprep.mubr.bf16.mxu0 0
    %422 = vmatmul.mubr.bf16.gmra.mrb[0].mxu0 %v278
    %v423 = vpop.f32.mrb[0].mxu0
    %v424 = vadd.f32 0.0, %v423
    %v425 = vpop.f32.mrb[0].mxu0
    %v426 = vpop.f32.mrb[0].mxu0
    %v427 = vadd.f32 0.0, %v426
    %v428 = vpop.f32.mrb[0].mxu0
    %429 = vmatprep.mubr.bf16.mxu0 0
    %430 = vmatmul.mubr.bf16.gmra.mrb[0].mxu0 %v281
    %v431 = vpop.f32.mrb[0].mxu0
    %v432 = vadd.f32 0.0, %v431
    %v433 = vpop.f32.mrb[0].mxu0
    %v434 = vpop.f32.mrb[0].mxu0
    %v435 = vadd.f32 0.0, %v434
    %v436 = vpop.f32.mrb[0].mxu0
    %437 = vmatprep.mubr.bf16.mxu0 0
    %438 = vmatmul.mubr.bf16.gmra.mrb[0].mxu0 %v284
    %v439 = vpop.f32.mrb[0].mxu0
    %v440 = vadd.f32 0.0, %v439
    %v441 = vpop.f32.mrb[0].mxu0
    %v442 = vpop.f32.mrb[0].mxu0
    %v443 = vadd.f32 0.0, %v442
    %v444 = vpop.f32.mrb[0].mxu0
    %445 = vmatprep.mubr.bf16.mxu0 0
    %446 = vmatmul.mubr.bf16.gmra.mrb[0].mxu0 %v287
    %v447 = vpop.f32.mrb[0].mxu0
    %v448 = vadd.f32 0.0, %v447
    %v449 = vpop.f32.mrb[0].mxu0
    %v450 = vpop.f32.mrb[0].mxu0
    %v451 = vadd.f32 0.0, %v450
    %v452 = vpop.f32.mrb[0].mxu0
    %453 = vmatprep.mubr.bf16.mxu0 0
    %454 = vmatmul.mubr.bf16.gmra.mrb[0].mxu0 %v290
    %v455 = vpop.f32.mrb[0].mxu0
    %v456 = vadd.f32 0.0, %v455
    %v457 = vpop.f32.mrb[0].mxu0
    %v458 = vpop.f32.mrb[0].mxu0
    %v459 = vadd.f32 0.0, %v458
    %v460 = vpop.f32.mrb[0].mxu0
    %461 = vmatprep.mubr.bf16.mxu0 0
    %462 = vmatmul.mubr.bf16.gmra.mrb[0].mxu0 %v293
    %v463 = vpop.f32.mrb[0].mxu0
    %v464 = vadd.f32 0.0, %v463
    %v465 = vpop.f32.mrb[0].mxu0
    %v466 = vpop.f32.mrb[0].mxu0
    %v467 = vadd.f32 0.0, %v466
    %v468 = vpop.f32.mrb[0].mxu0
    %469 = vmatprep.mubr.bf16.mxu0 0
    %470 = vmatmul.mubr.bf16.gmra.mrb[0].mxu0 %v296
    %v471 = vpop.f32.mrb[0].mxu0
    %v472 = vadd.f32 0.0, %v471
    %v473 = vpop.f32.mrb[0].mxu0
    %v474 = vpop.f32.mrb[0].mxu0
    %v475 = vadd.f32 0.0, %v474
    %v476 = vpop.f32.mrb[0].mxu0
    %477 = vmatprep.mubr.bf16.mxu0 0
    %478 = vmatmul.mubr.bf16.gmra.mrb[0].mxu0 %v299
    %v479 = vpop.f32.mrb[0].mxu0
    %v480 = vadd.f32 0.0, %v479
    %v481 = vpop.f32.mrb[0].mxu0
    %v482 = vpop.f32.mrb[0].mxu0
    %v483 = vadd.f32 0.0, %v482
    %v484 = vpop.f32.mrb[0].mxu0
    %485 = vmatprep.mubr.bf16.mxu0 0
    %486 = vmatmul.mubr.bf16.gmra.mrb[0].mxu0 %v302
    %v487 = vpop.f32.mrb[0].mxu0
    %v488 = vadd.f32 0.0, %v487
    %v489 = vpop.f32.mrb[0].mxu0
    %v490 = vpop.f32.mrb[0].mxu0
    %v491 = vadd.f32 0.0, %v490
    %v492 = vpop.f32.mrb[0].mxu0
    %493 = vmatprep.mubr.bf16.mxu0 0
    %494 = vmatmul.mubr.bf16.gmra.mrb[0].mxu0 %v305
    %v495 = vpop.f32.mrb[0].mxu0
    %v496 = vadd.f32 0.0, %v495
    %v497 = vpop.f32.mrb[0].mxu0
    %v498 = vpop.f32.mrb[0].mxu0
    %v499 = vadd.f32 0.0, %v498
    %v500 = vpop.f32.mrb[0].mxu0
    %501 = vmatprep.mubr.bf16.mxu0 0
    %502 = vmatmul.mubr.bf16.gmra.mrb[0].mxu0 %v308
    %v503 = vpop.f32.mrb[0].mxu0
    %v504 = vadd.f32 0.0, %v503
    %v505 = vpop.f32.mrb[0].mxu0
    %v506 = vpop.f32.mrb[0].mxu0
    %v507 = vadd.f32 0.0, %v506
    %v508 = vpop.f32.mrb[0].mxu0
    %509 = vmatprep.mubr.bf16.mxu0 0
    %510 = vmatmul.mubr.bf16.gmra.mrb[0].mxu0 %v311
    %v511 = vpop.f32.mrb[0].mxu0
    %v512 = vadd.f32 0.0, %v511
    %v513 = vpop.f32.mrb[0].mxu0
    %v514 = vpop.f32.mrb[0].mxu0
    %v515 = vadd.f32 0.0, %v514
    %v516 = vpop.f32.mrb[0].mxu0
    %517 = vmatprep.mubr.bf16.mxu0 0
    %518 = vmatmul.mubr.bf16.gmra.mrb[0].mxu0 %v314
    %v519 = vpop.f32.mrb[0].mxu0
    %v520 = vadd.f32 0.0, %v519
    %v521 = vpop.f32.mrb[0].mxu0
    %v522 = vpop.f32.mrb[0].mxu0
    %v523 = vadd.f32 0.0, %v522
    %v524 = vpop.f32.mrb[0].mxu0
    %525 = vmatprep.mubr.bf16.mxu0 0
    %526 = vmatmul.mubr.bf16.gmra.mrb[0].mxu0 %v317
    %v527 = vpop.f32.mrb[0].mxu0
    %v528 = vadd.f32 0.0, %v527
    %v529 = vpop.f32.mrb[0].mxu0
    %v530 = vpop.f32.mrb[0].mxu0
    %v531 = vadd.f32 0.0, %v530
    %v532 = vpop.f32.mrb[0].mxu0
    %533 = vmatprep.mubr.bf16.mxu0 0
    %534 = vmatmul.mubr.bf16.gmra.mrb[0].mxu0 %v320
    %v535 = vpop.f32.mrb[0].mxu0
    %v536 = vadd.f32 0.0, %v535
    %v537 = vpop.f32.mrb[0].mxu0
    %v538 = vpop.f32.mrb[0].mxu0
    %v539 = vadd.f32 0.0, %v538
    %v540 = vpop.f32.mrb[0].mxu0
    %541 = vmatprep.mubr.bf16.mxu0 0
    %542 = vmatmul.mubr.bf16.gmra.mrb[0].mxu0 %v323
    %v543 = vpop.f32.mrb[0].mxu0
    %v544 = vadd.f32 0.0, %v543
    %v545 = vpop.f32.mrb[0].mxu0
    %v546 = vpop.f32.mrb[0].mxu0
    %v547 = vadd.f32 0.0, %v546
    %v548 = vpop.f32.mrb[0].mxu0
    %549 = vmatprep.mubr.bf16.mxu0 0
    %550 = vmatmul.mubr.bf16.gmra.mrb[0].mxu0 %v326
    %v551 = vpop.f32.mrb[0].mxu0
    %v552 = vadd.f32 0.0, %v551
    %v553 = vpop.f32.mrb[0].mxu0
    %v554 = vpop.f32.mrb[0].mxu0
    %v555 = vadd.f32 0.0, %v554
    %v556 = vpop.f32.mrb[0].mxu0
    %557 = vmatprep.mubr.bf16.mxu0 0
    %558 = vmatmul.mubr.bf16.gmra.mrb[0].mxu0 %v329
    %v559 = vpop.f32.mrb[0].mxu0
    %v560 = vadd.f32 0.0, %v559
    %v561 = vpop.f32.mrb[0].mxu0
    %v562 = vpop.f32.mrb[0].mxu0
    %v563 = vadd.f32 0.0, %v562
    %v564 = vpop.f32.mrb[0].mxu0
    %565 = vmatprep.mubr.bf16.mxu0 0
    %566 = vmatmul.mubr.bf16.gmra.mrb[0].mxu0 %v332
    %v567 = vpop.f32.mrb[0].mxu0
    %v568 = vadd.f32 0.0, %v567
    %v569 = vpop.f32.mrb[0].mxu0
    %v570 = vpop.f32.mrb[0].mxu0
    %v571 = vadd.f32 0.0, %v570
    %v572 = vpop.f32.mrb[0].mxu0
    %573 = vmatprep.mubr.bf16.mxu0 0
    %574 = vmatmul.mubr.bf16.gmra.mrb[0].mxu0 %v335
    %v575 = vpop.f32.mrb[0].mxu0
    %v576 = vadd.f32 0.0, %v575
    %v577 = vpop.f32.mrb[0].mxu0
    %v578 = vpop.f32.mrb[0].mxu0
    %v579 = vadd.f32 0.0, %v578
    %v580 = vpop.f32.mrb[0].mxu0
    %581 = vmatprep.mubr.bf16.mxu0 0
    %582 = vmatmul.mubr.bf16.gmra.mrb[0].mxu0 %v338
    %v583 = vpop.f32.mrb[0].mxu0
    %v584 = vadd.f32 0.0, %v583
    %v585 = vpop.f32.mrb[0].mxu0
    %v586 = vpop.f32.mrb[0].mxu0
    %v587 = vadd.f32 0.0, %v586
    %v588 = vpop.f32.mrb[0].mxu0
    %589 = vmatprep.mubr.bf16.mxu0 0
    %590 = vmatmul.mubr.bf16.gmra.mrb[0].mxu0 %v341
    %v591 = vpop.f32.mrb[0].mxu0
    %v592 = vadd.f32 0.0, %v591
    %v593 = vpop.f32.mrb[0].mxu0
    %v594 = vpop.f32.mrb[0].mxu0
    %v595 = vadd.f32 0.0, %v594
    %v596 = vpop.f32.mrb[0].mxu0
    %597 = vmatprep.mubr.bf16.mxu0 0
    %598 = vmatmul.mubr.bf16.gmra.mrb[0].mxu0 %v344
    %v599 = vpop.f32.mrb[0].mxu0
    %v600 = vadd.f32 0.0, %v599
    %v601 = vpop.f32.mrb[0].mxu0
    %v602 = vpop.f32.mrb[0].mxu0
    %v603 = vadd.f32 0.0, %v602
    %v604 = vpop.f32.mrb[0].mxu0
    %605 = vmatprep.mubr.bf16.mxu0 0
    %606 = vmatmul.mubr.bf16.gmra.mrb[0].mxu0 %v347
    %v607 = vpop.f32.mrb[0].mxu0
    %v608 = vadd.f32 0.0, %v607
    %v609 = vpop.f32.mrb[0].mxu0
    %v610 = vpop.f32.mrb[0].mxu0
    %v611 = vadd.f32 0.0, %v610
    %v612 = vpop.f32.mrb[0].mxu0
    %613 = vmatprep.mubr.bf16.mxu0 0
    %614 = vmatmul.mubr.bf16.gmra.mrb[0].mxu0 %v350
    %v615 = vpop.f32.mrb[0].mxu0
    %v616 = vadd.f32 0.0, %v615
    %v617 = vpop.f32.mrb[0].mxu0
    %v618 = vpop.f32.mrb[0].mxu0
    %v619 = vadd.f32 0.0, %v618
    %v620 = vpop.f32.mrb[0].mxu0
    %621 = vmatprep.mubr.bf16.mxu0 0
    %622 = vmatmul.mubr.bf16.gmra.mrb[0].mxu0 %v353
    %v623 = vpop.f32.mrb[0].mxu0
    %v624 = vadd.f32 0.0, %v623
    %v625 = vpop.f32.mrb[0].mxu0
    %v626 = vpop.f32.mrb[0].mxu0
    %v627 = vadd.f32 0.0, %v626
    %v628 = vpop.f32.mrb[0].mxu0
    %629 = vmatprep.mubr.bf16.mxu0 0
    %630 = vmatmul.mubr.bf16.gmra.mrb[0].mxu0 %v356
    %v631 = vpop.f32.mrb[0].mxu0
    %v632 = vadd.f32 0.0, %v631
    %v633 = vpop.f32.mrb[0].mxu0
    %v634 = vpop.f32.mrb[0].mxu0
    %v635 = vadd.f32 0.0, %v634
    %v636 = vpop.f32.mrb[0].mxu0
    %637 = vmatprep.mubr.bf16.mxu0 0
    %638 = vmatmul.mubr.bf16.gmra.mrb[0].mxu0 %v359
    %v639 = vpop.f32.mrb[0].mxu0
    %v640 = vadd.f32 0.0, %v639
    %v641 = vpop.f32.mrb[0].mxu0
    %v642 = vpop.f32.mrb[0].mxu0
    %v643 = vadd.f32 0.0, %v642
    %v644 = vpop.f32.mrb[0].mxu0
    %645 = vmatprep.mubr.bf16.mxu0 0
    %646 = vmatmul.mubr.bf16.gmra.mrb[0].mxu0 %v362
    %v647 = vpop.f32.mrb[0].mxu0
    %v648 = vadd.f32 0.0, %v647
    %v649 = vpop.f32.mrb[0].mxu0
    %v650 = vpop.f32.mrb[0].mxu0
    %v651 = vadd.f32 0.0, %v650
    %v652 = vpop.f32.mrb[0].mxu0
    %653 = vmatprep.mubr.bf16.mxu0 0
    %654 = vmatmul.mubr.bf16.gmra.mrb[0].mxu0 %v365
    %v655 = vpop.f32.mrb[0].mxu0
    %v656 = vadd.f32 0.0, %v655
    %v657 = vpop.f32.mrb[0].mxu0
    %v658 = vpop.f32.mrb[0].mxu0
    %v659 = vadd.f32 0.0, %v658
    %v660 = vpop.f32.mrb[0].mxu0
    %661 = vdwg.mxu0
    %v662 = vmax.f32 %v408, 0.0
    %v663 = vmax.f32 %v411, 0.0
    %v664 = vmax.f32 %v416, 0.0
    %v665 = vmax.f32 %v419, 0.0
    %v666 = vmax.f32 %v424, 0.0
    %v667 = vmax.f32 %v427, 0.0
    %v668 = vmax.f32 %v432, 0.0
    %v669 = vmax.f32 %v435, 0.0
    %v670 = vmax.f32 %v440, 0.0
    %v671 = vmax.f32 %v443, 0.0
    %v672 = vmax.f32 %v448, 0.0
    %v673 = vmax.f32 %v451, 0.0
    %v674 = vmax.f32 %v456, 0.0
    %v675 = vmax.f32 %v459, 0.0
    %v676 = vmax.f32 %v464, 0.0
    %v677 = vmax.f32 %v467, 0.0
    %v678 = vmax.f32 %v472, 0.0
    %v679 = vmax.f32 %v475, 0.0
    %v680 = vmax.f32 %v480, 0.0
    %v681 = vmax.f32 %v483, 0.0
    %v682 = vmax.f32 %v488, 0.0
    %v683 = vmax.f32 %v491, 0.0
    %v684 = vmax.f32 %v496, 0.0
    %v685 = vmax.f32 %v499, 0.0
    %v686 = vmax.f32 %v504, 0.0
    %v687 = vmax.f32 %v507, 0.0
    %v688 = vmax.f32 %v512, 0.0
    %v689 = vmax.f32 %v515, 0.0
    %v690 = vmax.f32 %v520, 0.0
    %v691 = vmax.f32 %v523, 0.0
    %v692 = vmax.f32 %v528, 0.0
    %v693 = vmax.f32 %v531, 0.0
    %v694 = vmax.f32 %v536, 0.0
    %v695 = vmax.f32 %v539, 0.0
    %v696 = vmax.f32 %v544, 0.0
    %v697 = vmax.f32 %v547, 0.0
    %v698 = vmax.f32 %v552, 0.0
    %v699 = vmax.f32 %v555, 0.0
    %v700 = vmax.f32 %v560, 0.0
    %v701 = vmax.f32 %v563, 0.0
    %v702 = vmax.f32 %v568, 0.0
    %v703 = vmax.f32 %v571, 0.0
    %v704 = vmax.f32 %v576, 0.0
    %v705 = vmax.f32 %v579, 0.0
    %v706 = vmax.f32 %v584, 0.0
    %v707 = vmax.f32 %v587, 0.0
    %v708 = vmax.f32 %v592, 0.0
    %v709 = vmax.f32 %v595, 0.0
    %v710 = vmax.f32 %v600, 0.0
    %v711 = vmax.f32 %v603, 0.0
    %v712 = vmax.f32 %v608, 0.0
    %v713 = vmax.f32 %v611, 0.0
    %v714 = vmax.f32 %v616, 0.0
    %v715 = vmax.f32 %v619, 0.0
    %v716 = vmax.f32 %v624, 0.0
    %v717 = vmax.f32 %v627, 0.0
    %v718 = vmax.f32 %v632, 0.0
    %v719 = vmax.f32 %v635, 0.0
    %v720 = vmax.f32 %v640, 0.0
    %v721 = vmax.f32 %v643, 0.0
    %v722 = vmax.f32 %v648, 0.0
    %v723 = vmax.f32 %v651, 0.0
    %v724 = vmax.f32 %v656, 0.0
    %v725 = vmax.f32 %v659, 0.0
    %v726 = vpack.c.bf16 %v663, %v662
    %v727 = vpack.c.bf16 %v665, %v664
    %v728 = vpack.c.bf16 %v667, %v666
    %v729 = vpack.c.bf16 %v669, %v668
    %v730 = vpack.c.bf16 %v671, %v670
    %v731 = vpack.c.bf16 %v673, %v672
    %v732 = vpack.c.bf16 %v675, %v674
    %v733 = vpack.c.bf16 %v677, %v676
    %v734 = vpack.c.bf16 %v679, %v678
    %v735 = vpack.c.bf16 %v681, %v680
    %v736 = vpack.c.bf16 %v683, %v682
    %v737 = vpack.c.bf16 %v685, %v684
    %v738 = vpack.c.bf16 %v687, %v686
    %v739 = vpack.c.bf16 %v689, %v688
    %v740 = vpack.c.bf16 %v691, %v690
    %v741 = vpack.c.bf16 %v693, %v692
    %v742 = vpack.c.bf16 %v695, %v694
    %v743 = vpack.c.bf16 %v697, %v696
    %v744 = vpack.c.bf16 %v699, %v698
    %v745 = vpack.c.bf16 %v701, %v700
    %v746 = vpack.c.bf16 %v703, %v702
    %v747 = vpack.c.bf16 %v705, %v704
    %v748 = vpack.c.bf16 %v707, %v706
    %v749 = vpack.c.bf16 %v709, %v708
    %v750 = vpack.c.bf16 %v711, %v710
    %v751 = vpack.c.bf16 %v713, %v712
    %v752 = vpack.c.bf16 %v715, %v714
    %v753 = vpack.c.bf16 %v717, %v716
    %v754 = vpack.c.bf16 %v719, %v718
    %v755 = vpack.c.bf16 %v721, %v720
    %v756 = vpack.c.bf16 %v723, %v722
    %v757 = vpack.c.bf16 %v725, %v724
    %v758 = vld [vmem:[%s2] sm:$0xff]
    %v759 = vld [vmem:[%s2 + $0x8] sm:$0xff]
    %v760 = vld [vmem:[%s2 + $0x10] sm:$0xff]
    %v761 = vld [vmem:[%s2 + $0x18] sm:$0xff]
    %v762 = vld [vmem:[%s2 + $0x20] sm:$0xff]
    %v763 = vld [vmem:[%s2 + $0x28] sm:$0xff]
    %v764 = vld [vmem:[%s2 + $0x30] sm:$0xff]
    %v765 = vld [vmem:[%s2 + $0x38] sm:$0xff]
    %v766 = vld [vmem:[%s2 + $0x40] sm:$0xff]
    %v767 = vld [vmem:[%s2 + $0x48] sm:$0xff]
    %v768 = vld [vmem:[%s2 + $0x50] sm:$0xff]
    %v769 = vld [vmem:[%s2 + $0x58] sm:$0xff]
    %v770 = vld [vmem:[%s2 + $0x60] sm:$0xff]
    %v771 = vld [vmem:[%s2 + $0x68] sm:$0xff]
    %v772 = vld [vmem:[%s2 + $0x70] sm:$0xff]
    %v773 = vld [vmem:[%s2 + $0x78] sm:$0xff]
    %v774 = vld [vmem:[%s2 + $0x80] sm:$0xff]
    %v775 = vld [vmem:[%s2 + $0x88] sm:$0xff]
    %v776 = vld [vmem:[%s2 + $0x90] sm:$0xff]
    %v777 = vld [vmem:[%s2 + $0x98] sm:$0xff]
    %v778 = vld [vmem:[%s2 + $0xa0] sm:$0xff]
    %v779 = vld [vmem:[%s2 + $0xa8] sm:$0xff]
    %v780 = vld [vmem:[%s2 + $0xb0] sm:$0xff]
    %v781 = vld [vmem:[%s2 + $0xb8] sm:$0xff]
    %v782 = vld [vmem:[%s2 + $0xc0] sm:$0xff]
    %v783 = vld [vmem:[%s2 + $0xc8] sm:$0xff]
    %v784 = vld [vmem:[%s2 + $0xd0] sm:$0xff]
    %v785 = vld [vmem:[%s2 + $0xd8] sm:$0xff]
    %v786 = vld [vmem:[%s2 + $0xe0] sm:$0xff]
    %v787 = vld [vmem:[%s2 + $0xe8] sm:$0xff]
    %v788 = vld [vmem:[%s2 + $0xf0] sm:$0xff]
    %v789 = vld [vmem:[%s2 + $0xf8] sm:$0xff]
    %v790 = vld [vmem:[%s2 + $0x100] sm:$0xff]
    %v791 = vld [vmem:[%s2 + $0x108] sm:$0xff]
    %v792 = vld [vmem:[%s2 + $0x110] sm:$0xff]
    %v793 = vld [vmem:[%s2 + $0x118] sm:$0xff]
    %v794 = vld [vmem:[%s2 + $0x120] sm:$0xff]
    %v795 = vld [vmem:[%s2 + $0x128] sm:$0xff]
    %v796 = vld [vmem:[%s2 + $0x130] sm:$0xff]
    %v797 = vld [vmem:[%s2 + $0x138] sm:$0xff]
    %v798 = vld [vmem:[%s2 + $0x140] sm:$0xff]
    %v799 = vld [vmem:[%s2 + $0x148] sm:$0xff]
    %v800 = vld [vmem:[%s2 + $0x150] sm:$0xff]
    %v801 = vld [vmem:[%s2 + $0x158] sm:$0xff]
    %v802 = vld [vmem:[%s2 + $0x160] sm:$0xff]
    %v803 = vld [vmem:[%s2 + $0x168] sm:$0xff]
    %v804 = vld [vmem:[%s2 + $0x170] sm:$0xff]
    %v805 = vld [vmem:[%s2 + $0x178] sm:$0xff]
    %v806 = vld [vmem:[%s2 + $0x180] sm:$0xff]
    %v807 = vld [vmem:[%s2 + $0x188] sm:$0xff]
    %v808 = vld [vmem:[%s2 + $0x190] sm:$0xff]
    %v809 = vld [vmem:[%s2 + $0x198] sm:$0xff]
    %v810 = vld [vmem:[%s2 + $0x1a0] sm:$0xff]
    %v811 = vld [vmem:[%s2 + $0x1a8] sm:$0xff]
    %v812 = vld [vmem:[%s2 + $0x1b0] sm:$0xff]
    %v813 = vld [vmem:[%s2 + $0x1b8] sm:$0xff]
    %v814 = vld [vmem:[%s2 + $0x1c0] sm:$0xff]
    %v815 = vld [vmem:[%s2 + $0x1c8] sm:$0xff]
    %v816 = vld [vmem:[%s2 + $0x1d0] sm:$0xff]
    %v817 = vld [vmem:[%s2 + $0x1d8] sm:$0xff]
    %v818 = vld [vmem:[%s2 + $0x1e0] sm:$0xff]
    %v819 = vld [vmem:[%s2 + $0x1e8] sm:$0xff]
    %v820 = vld [vmem:[%s2 + $0x1f0] sm:$0xff]
    %v821 = vld [vmem:[%s2 + $0x1f8] sm:$0xff]
    %v822 = vld [vmem:[%s3] sm:$0xff]
    %v823 = vld [vmem:[%s3 + $0x8] sm:$0xff]
    %v824 = vld [vmem:[%s3 + $0x10] sm:$0xff]
    %v825 = vld [vmem:[%s3 + $0x18] sm:$0xff]
    %v826 = vld [vmem:[%s3 + $0x20] sm:$0xff]
    %v827 = vld [vmem:[%s3 + $0x28] sm:$0xff]
    %v828 = vld [vmem:[%s3 + $0x30] sm:$0xff]
    %v829 = vld [vmem:[%s3 + $0x38] sm:$0xff]
    %v830 = vld [vmem:[%s3 + $0x40] sm:$0xff]
    %v831 = vld [vmem:[%s3 + $0x48] sm:$0xff]
    %v832 = vld [vmem:[%s3 + $0x50] sm:$0xff]
    %v833 = vld [vmem:[%s3 + $0x58] sm:$0xff]
    %v834 = vld [vmem:[%s3 + $0x60] sm:$0xff]
    %v835 = vld [vmem:[%s3 + $0x68] sm:$0xff]
    %v836 = vld [vmem:[%s3 + $0x70] sm:$0xff]
    %v837 = vld [vmem:[%s3 + $0x78] sm:$0xff]
    %v838 = vld [vmem:[%s3 + $0x80] sm:$0xff]
    %v839 = vld [vmem:[%s3 + $0x88] sm:$0xff]
    %v840 = vld [vmem:[%s3 + $0x90] sm:$0xff]
    %v841 = vld [vmem:[%s3 + $0x98] sm:$0xff]
    %v842 = vld [vmem:[%s3 + $0xa0] sm:$0xff]
    %v843 = vld [vmem:[%s3 + $0xa8] sm:$0xff]
    %v844 = vld [vmem:[%s3 + $0xb0] sm:$0xff]
    %v845 = vld [vmem:[%s3 + $0xb8] sm:$0xff]
    %v846 = vld [vmem:[%s3 + $0xc0] sm:$0xff]
    %v847 = vld [vmem:[%s3 + $0xc8] sm:$0xff]
    %v848 = vld [vmem:[%s3 + $0xd0] sm:$0xff]
    %v849 = vld [vmem:[%s3 + $0xd8] sm:$0xff]
    %v850 = vld [vmem:[%s3 + $0xe0] sm:$0xff]
    %v851 = vld [vmem:[%s3 + $0xe8] sm:$0xff]
    %v852 = vld [vmem:[%s3 + $0xf0] sm:$0xff]
    %v853 = vld [vmem:[%s3 + $0xf8] sm:$0xff]
    %855 = vset.pattern.permute.xlu0 0
    %856 = vperm.xlu0 %855, %v822
    %v857 = vpop.permute.xlu0 %856
    %860 = vset.pattern.permute.xlu0 0
    %861 = vperm.xlu0 %860, %v823
    %v862 = vpop.permute.xlu0 %861
    %865 = vset.pattern.permute.xlu0 0
    %866 = vperm.xlu0 %865, %v824
    %v867 = vpop.permute.xlu0 %866
    %870 = vset.pattern.permute.xlu0 0
    %871 = vperm.xlu0 %870, %v825
    %v872 = vpop.permute.xlu0 %871
    %875 = vset.pattern.permute.xlu0 0
    %876 = vperm.xlu0 %875, %v826
    %v877 = vpop.permute.xlu0 %876
    %880 = vset.pattern.permute.xlu0 0
    %881 = vperm.xlu0 %880, %v827
    %v882 = vpop.permute.xlu0 %881
    %885 = vset.pattern.permute.xlu0 0
    %886 = vperm.xlu0 %885, %v828
    %v887 = vpop.permute.xlu0 %886
    %890 = vset.pattern.permute.xlu0 0
    %891 = vperm.xlu0 %890, %v829
    %v892 = vpop.permute.xlu0 %891
    %895 = vset.pattern.permute.xlu0 0
    %896 = vperm.xlu0 %895, %v830
    %v897 = vpop.permute.xlu0 %896
    %900 = vset.pattern.permute.xlu0 0
    %901 = vperm.xlu0 %900, %v831
    %v902 = vpop.permute.xlu0 %901
    %905 = vset.pattern.permute.xlu0 0
    %906 = vperm.xlu0 %905, %v832
    %v907 = vpop.permute.xlu0 %906
    %910 = vset.pattern.permute.xlu0 0
    %911 = vperm.xlu0 %910, %v833
    %v912 = vpop.permute.xlu0 %911
    %915 = vset.pattern.permute.xlu0 0
    %916 = vperm.xlu0 %915, %v834
    %v917 = vpop.permute.xlu0 %916
    %920 = vset.pattern.permute.xlu0 0
    %921 = vperm.xlu0 %920, %v835
    %v922 = vpop.permute.xlu0 %921
    %925 = vset.pattern.permute.xlu0 0
    %926 = vperm.xlu0 %925, %v836
    %v927 = vpop.permute.xlu0 %926
    %930 = vset.pattern.permute.xlu0 0
    %931 = vperm.xlu0 %930, %v837
    %v932 = vpop.permute.xlu0 %931
    %935 = vset.pattern.permute.xlu0 0
    %936 = vperm.xlu0 %935, %v838
    %v937 = vpop.permute.xlu0 %936
    %940 = vset.pattern.permute.xlu0 0
    %941 = vperm.xlu0 %940, %v839
    %v942 = vpop.permute.xlu0 %941
    %945 = vset.pattern.permute.xlu0 0
    %946 = vperm.xlu0 %945, %v840
    %v947 = vpop.permute.xlu0 %946
    %950 = vset.pattern.permute.xlu0 0
    %951 = vperm.xlu0 %950, %v841
    %v952 = vpop.permute.xlu0 %951
    %955 = vset.pattern.permute.xlu0 0
    %956 = vperm.xlu0 %955, %v842
    %v957 = vpop.permute.xlu0 %956
    %960 = vset.pattern.permute.xlu0 0
    %961 = vperm.xlu0 %960, %v843
    %v962 = vpop.permute.xlu0 %961
    %965 = vset.pattern.permute.xlu0 0
    %966 = vperm.xlu0 %965, %v844
    %v967 = vpop.permute.xlu0 %966
    %970 = vset.pattern.permute.xlu0 0
    %971 = vperm.xlu0 %970, %v845
    %v972 = vpop.permute.xlu0 %971
    %975 = vset.pattern.permute.xlu0 0
    %976 = vperm.xlu0 %975, %v846
    %v977 = vpop.permute.xlu0 %976
    %980 = vset.pattern.permute.xlu0 0
    %981 = vperm.xlu0 %980, %v847
    %v982 = vpop.permute.xlu0 %981
    %985 = vset.pattern.permute.xlu0 0
    %986 = vperm.xlu0 %985, %v848
    %v987 = vpop.permute.xlu0 %986
    %990 = vset.pattern.permute.xlu0 0
    %991 = vperm.xlu0 %990, %v849
    %v992 = vpop.permute.xlu0 %991
    %995 = vset.pattern.permute.xlu0 0
    %996 = vperm.xlu0 %995, %v850
    %v997 = vpop.permute.xlu0 %996
    %1000 = vset.pattern.permute.xlu0 0
    %1001 = vperm.xlu0 %1000, %v851
    %v1002 = vpop.permute.xlu0 %1001
    %1005 = vset.pattern.permute.xlu0 0
    %1006 = vperm.xlu0 %1005, %v852
    %v1007 = vpop.permute.xlu0 %1006
    %1010 = vset.pattern.permute.xlu0 0
    %1011 = vperm.xlu0 %1010, %v853
    %v1012 = vpop.permute.xlu0 %1011
    %v1078 = vunpack.c.l.b16 %v758
    %v1079 = vunpack.c.h.b16 %v758
    %v1080 = vunpack.c.l.b16 %v759
    %v1081 = vunpack.c.h.b16 %v759
    %v1082 = vunpack.c.l.b16 %v760
    %v1083 = vunpack.c.h.b16 %v760
    %v1084 = vunpack.c.l.b16 %v761
    %v1085 = vunpack.c.h.b16 %v761
    %v1086 = vunpack.c.l.b16 %v762
    %v1087 = vunpack.c.h.b16 %v762
    %v1088 = vunpack.c.l.b16 %v763
    %v1089 = vunpack.c.h.b16 %v763
    %v1090 = vunpack.c.l.b16 %v764
    %v1091 = vunpack.c.h.b16 %v764
    %v1092 = vunpack.c.l.b16 %v765
    %v1093 = vunpack.c.h.b16 %v765
    %v1094 = vunpack.c.l.b16 %v766
    %v1095 = vunpack.c.h.b16 %v766
    %v1096 = vunpack.c.l.b16 %v767
    %v1097 = vunpack.c.h.b16 %v767
    %v1098 = vunpack.c.l.b16 %v768
    %v1099 = vunpack.c.h.b16 %v768
    %v1100 = vunpack.c.l.b16 %v769
    %v1101 = vunpack.c.h.b16 %v769
    %v1102 = vunpack.c.l.b16 %v770
    %v1103 = vunpack.c.h.b16 %v770
    %v1104 = vunpack.c.l.b16 %v771
    %v1105 = vunpack.c.h.b16 %v771
    %v1106 = vunpack.c.l.b16 %v772
    %v1107 = vunpack.c.h.b16 %v772
    %v1108 = vunpack.c.l.b16 %v773
    %v1109 = vunpack.c.h.b16 %v773
    %v1110 = vunpack.c.l.b16 %v774
    %v1111 = vunpack.c.h.b16 %v774
    %v1112 = vunpack.c.l.b16 %v775
    %v1113 = vunpack.c.h.b16 %v775
    %v1114 = vunpack.c.l.b16 %v776
    %v1115 = vunpack.c.h.b16 %v776
    %v1116 = vunpack.c.l.b16 %v777
    %v1117 = vunpack.c.h.b16 %v777
    %v1118 = vunpack.c.l.b16 %v778
    %v1119 = vunpack.c.h.b16 %v778
    %v1120 = vunpack.c.l.b16 %v779
    %v1121 = vunpack.c.h.b16 %v779
    %v1122 = vunpack.c.l.b16 %v780
    %v1123 = vunpack.c.h.b16 %v780
    %v1124 = vunpack.c.l.b16 %v781
    %v1125 = vunpack.c.h.b16 %v781
    %v1126 = vunpack.c.l.b16 %v782
    %v1127 = vunpack.c.h.b16 %v782
    %v1128 = vunpack.c.l.b16 %v783
    %v1129 = vunpack.c.h.b16 %v783
    %v1130 = vunpack.c.l.b16 %v784
    %v1131 = vunpack.c.h.b16 %v784
    %v1132 = vunpack.c.l.b16 %v785
    %v1133 = vunpack.c.h.b16 %v785
    %v1134 = vunpack.c.l.b16 %v786
    %v1135 = vunpack.c.h.b16 %v786
    %v1136 = vunpack.c.l.b16 %v787
    %v1137 = vunpack.c.h.b16 %v787
    %v1138 = vunpack.c.l.b16 %v788
    %v1139 = vunpack.c.h.b16 %v788
    %v1140 = vunpack.c.l.b16 %v789
    %v1141 = vunpack.c.h.b16 %v789
    %v1142 = vunpack.c.l.b16 %v790
    %v1143 = vunpack.c.h.b16 %v790
    %v1144 = vunpack.c.l.b16 %v791
    %v1145 = vunpack.c.h.b16 %v791
    %v1146 = vunpack.c.l.b16 %v792
    %v1147 = vunpack.c.h.b16 %v792
    %v1148 = vunpack.c.l.b16 %v793
    %v1149 = vunpack.c.h.b16 %v793
    %v1150 = vunpack.c.l.b16 %v794
    %v1151 = vunpack.c.h.b16 %v794
    %v1152 = vunpack.c.l.b16 %v795
    %v1153 = vunpack.c.h.b16 %v795
    %v1154 = vunpack.c.l.b16 %v796
    %v1155 = vunpack.c.h.b16 %v796
    %v1156 = vunpack.c.l.b16 %v797
    %v1157 = vunpack.c.h.b16 %v797
    %v1158 = vunpack.c.l.b16 %v798
    %v1159 = vunpack.c.h.b16 %v798
    %v1160 = vunpack.c.l.b16 %v799
    %v1161 = vunpack.c.h.b16 %v799
    %v1162 = vunpack.c.l.b16 %v800
    %v1163 = vunpack.c.h.b16 %v800
    %v1164 = vunpack.c.l.b16 %v801
    %v1165 = vunpack.c.h.b16 %v801
    %v1166 = vunpack.c.l.b16 %v802
    %v1167 = vunpack.c.h.b16 %v802
    %v1168 = vunpack.c.l.b16 %v803
    %v1169 = vunpack.c.h.b16 %v803
    %v1170 = vunpack.c.l.b16 %v804
    %v1171 = vunpack.c.h.b16 %v804
    %v1172 = vunpack.c.l.b16 %v805
    %v1173 = vunpack.c.h.b16 %v805
    %v1174 = vunpack.c.l.b16 %v806
    %v1175 = vunpack.c.h.b16 %v806
    %v1176 = vunpack.c.l.b16 %v807
    %v1177 = vunpack.c.h.b16 %v807
    %v1178 = vunpack.c.l.b16 %v808
    %v1179 = vunpack.c.h.b16 %v808
    %v1180 = vunpack.c.l.b16 %v809
    %v1181 = vunpack.c.h.b16 %v809
    %v1182 = vunpack.c.l.b16 %v810
    %v1183 = vunpack.c.h.b16 %v810
    %v1184 = vunpack.c.l.b16 %v811
    %v1185 = vunpack.c.h.b16 %v811
    %v1186 = vunpack.c.l.b16 %v812
    %v1187 = vunpack.c.h.b16 %v812
    %v1188 = vunpack.c.l.b16 %v813
    %v1189 = vunpack.c.h.b16 %v813
    %v1190 = vunpack.c.l.b16 %v814
    %v1191 = vunpack.c.h.b16 %v814
    %v1192 = vunpack.c.l.b16 %v815
    %v1193 = vunpack.c.h.b16 %v815
    %v1194 = vunpack.c.l.b16 %v816
    %v1195 = vunpack.c.h.b16 %v816
    %v1196 = vunpack.c.l.b16 %v817
    %v1197 = vunpack.c.h.b16 %v817
    %v1198 = vunpack.c.l.b16 %v818
    %v1199 = vunpack.c.h.b16 %v818
    %v1200 = vunpack.c.l.b16 %v819
    %v1201 = vunpack.c.h.b16 %v819
    %v1202 = vunpack.c.l.b16 %v820
    %v1203 = vunpack.c.h.b16 %v820
    %v1204 = vunpack.c.l.b16 %v821
    %v1205 = vunpack.c.h.b16 %v821
    %v1206 = vpack.c.b16 %v1082, %v1078
    %v1207 = vpack.c.b16 %v1083, %v1079
    %v1208 = vpack.c.b16 %v1084, %v1080
    %v1209 = vpack.c.b16 %v1085, %v1081
    %v1210 = vpack.c.b16 %v1090, %v1086
    %v1211 = vpack.c.b16 %v1091, %v1087
    %v1212 = vpack.c.b16 %v1092, %v1088
    %v1213 = vpack.c.b16 %v1093, %v1089
    %v1214 = vpack.c.b16 %v1098, %v1094
    %v1215 = vpack.c.b16 %v1099, %v1095
    %v1216 = vpack.c.b16 %v1100, %v1096
    %v1217 = vpack.c.b16 %v1101, %v1097
    %v1218 = vpack.c.b16 %v1106, %v1102
    %v1219 = vpack.c.b16 %v1107, %v1103
    %v1220 = vpack.c.b16 %v1108, %v1104
    %v1221 = vpack.c.b16 %v1109, %v1105
    %v1222 = vpack.c.b16 %v1114, %v1110
    %v1223 = vpack.c.b16 %v1115, %v1111
    %v1224 = vpack.c.b16 %v1116, %v1112
    %v1225 = vpack.c.b16 %v1117, %v1113
    %v1226 = vpack.c.b16 %v1122, %v1118
    %v1227 = vpack.c.b16 %v1123, %v1119
    %v1228 = vpack.c.b16 %v1124, %v1120
    %v1229 = vpack.c.b16 %v1125, %v1121
    %v1230 = vpack.c.b16 %v1130, %v1126
    %v1231 = vpack.c.b16 %v1131, %v1127
    %v1232 = vpack.c.b16 %v1132, %v1128
    %v1233 = vpack.c.b16 %v1133, %v1129
    %v1234 = vpack.c.b16 %v1138, %v1134
    %v1235 = vpack.c.b16 %v1139, %v1135
    %v1236 = vpack.c.b16 %v1140, %v1136
    %v1237 = vpack.c.b16 %v1141, %v1137
    %v1238 = vpack.c.b16 %v1146, %v1142
    %v1239 = vpack.c.b16 %v1147, %v1143
    %v1240 = vpack.c.b16 %v1148, %v1144
    %v1241 = vpack.c.b16 %v1149, %v1145
    %v1242 = vpack.c.b16 %v1154, %v1150
    %v1243 = vpack.c.b16 %v1155, %v1151
    %v1244 = vpack.c.b16 %v1156, %v1152
    %v1245 = vpack.c.b16 %v1157, %v1153
    %v1246 = vpack.c.b16 %v1162, %v1158
    %v1247 = vpack.c.b16 %v1163, %v1159
    %v1248 = vpack.c.b16 %v1164, %v1160
    %v1249 = vpack.c.b16 %v1165, %v1161
    %v1250 = vpack.c.b16 %v1170, %v1166
    %v1251 = vpack.c.b16 %v1171, %v1167
    %v1252 = vpack.c.b16 %v1172, %v1168
    %v1253 = vpack.c.b16 %v1173, %v1169
    %v1254 = vpack.c.b16 %v1178, %v1174
    %v1255 = vpack.c.b16 %v1179, %v1175
    %v1256 = vpack.c.b16 %v1180, %v1176
    %v1257 = vpack.c.b16 %v1181, %v1177
    %v1258 = vpack.c.b16 %v1186, %v1182
    %v1259 = vpack.c.b16 %v1187, %v1183
    %v1260 = vpack.c.b16 %v1188, %v1184
    %v1261 = vpack.c.b16 %v1189, %v1185
    %v1262 = vpack.c.b16 %v1194, %v1190
    %v1263 = vpack.c.b16 %v1195, %v1191
    %v1264 = vpack.c.b16 %v1196, %v1192
    %v1265 = vpack.c.b16 %v1197, %v1193
    %v1266 = vpack.c.b16 %v1202, %v1198
    %v1267 = vpack.c.b16 %v1203, %v1199
    %v1268 = vpack.c.b16 %v1204, %v1200
    %v1269 = vpack.c.b16 %v1205, %v1201
    %1334 = vmatprep.subr.bf16.mxu0 0
    %1335 = vmatpush1.bf16.msra.mxu0 %v726
    %1336 = vmatprep.subr.bf16.mxu0 0
    %1337 = vmatpush1.bf16.msra.mxu0 %v727
    %1338 = vmatprep.subr.bf16.mxu0 0
    %1339 = vmatpush1.bf16.msra.mxu0 %v728
    %1340 = vmatprep.subr.bf16.mxu0 0
    %1341 = vmatpush1.bf16.msra.mxu0 %v729
    %1342 = vmatprep.subr.bf16.mxu0 0
    %1343 = vmatpush1.bf16.msra.mxu0 %v730
    %1344 = vmatprep.subr.bf16.mxu0 0
    %1345 = vmatpush1.bf16.msra.mxu0 %v731
    %1346 = vmatprep.subr.bf16.mxu0 0
    %1347 = vmatpush1.bf16.msra.mxu0 %v732
    %1348 = vmatprep.subr.bf16.mxu0 0
    %1349 = vmatpush1.bf16.msra.mxu0 %v733
    %1350 = vmatprep.subr.bf16.mxu0 0
    %1351 = vmatpush1.bf16.msra.mxu0 %v734
    %1352 = vmatprep.subr.bf16.mxu0 0
    %1353 = vmatpush1.bf16.msra.mxu0 %v735
    %1354 = vmatprep.subr.bf16.mxu0 0
    %1355 = vmatpush1.bf16.msra.mxu0 %v736
    %1356 = vmatprep.subr.bf16.mxu0 0
    %1357 = vmatpush1.bf16.msra.mxu0 %v737
    %1358 = vmatprep.subr.bf16.mxu0 0
    %1359 = vmatpush1.bf16.msra.mxu0 %v738
    %1360 = vmatprep.subr.bf16.mxu0 0
    %1361 = vmatpush1.bf16.msra.mxu0 %v739
    %1362 = vmatprep.subr.bf16.mxu0 0
    %1363 = vmatpush1.bf16.msra.mxu0 %v740
    %1364 = vmatprep.subr.bf16.mxu0 0
    %1365 = vmatpush1.bf16.msra.mxu0 %v741
    %1366 = vmatprep.mubr.bf16.mxu0 %v1207
    %1367 = vmatmul.mubr.bf16.gmra.mrb[0].mxu0 %v1206
    %v1368 = vpop.f32.mrb[0].mxu0
    %v1369 = vadd.f32 %v857, %v1368
    %v1370 = vpop.f32.mrb[0].mxu0
    %v1371 = vpop.f32.mrb[0].mxu0
    %v1372 = vadd.f32 %v862, %v1371
    %v1373 = vpop.f32.mrb[0].mxu0
    %1374 = vmatprep.mubr.bf16.mxu0 %v1211
    %1375 = vmatmul.mubr.bf16.gmra.mrb[0].mxu0 %v1210
    %v1376 = vpop.f32.mrb[0].mxu0
    %v1377 = vadd.f32 %v867, %v1376
    %v1378 = vpop.f32.mrb[0].mxu0
    %v1379 = vpop.f32.mrb[0].mxu0
    %v1380 = vadd.f32 %v872, %v1379
    %v1381 = vpop.f32.mrb[0].mxu0
    %1382 = vmatprep.mubr.bf16.mxu0 %v1215
    %1383 = vmatmul.mubr.bf16.gmra.mrb[0].mxu0 %v1214
    %v1384 = vpop.f32.mrb[0].mxu0
    %v1385 = vadd.f32 %v877, %v1384
    %v1386 = vpop.f32.mrb[0].mxu0
    %v1387 = vpop.f32.mrb[0].mxu0
    %v1388 = vadd.f32 %v882, %v1387
    %v1389 = vpop.f32.mrb[0].mxu0
    %1390 = vmatprep.mubr.bf16.mxu0 %v1219
    %1391 = vmatmul.mubr.bf16.gmra.mrb[0].mxu0 %v1218
    %v1392 = vpop.f32.mrb[0].mxu0
    %v1393 = vadd.f32 %v887, %v1392
    %v1394 = vpop.f32.mrb[0].mxu0
    %v1395 = vpop.f32.mrb[0].mxu0
    %v1396 = vadd.f32 %v892, %v1395
    %v1397 = vpop.f32.mrb[0].mxu0
    %1398 = vmatprep.mubr.bf16.mxu0 %v1223
    %1399 = vmatmul.mubr.bf16.gmra.mrb[0].mxu0 %v1222
    %v1400 = vpop.f32.mrb[0].mxu0
    %v1401 = vadd.f32 %v897, %v1400
    %v1402 = vpop.f32.mrb[0].mxu0
    %v1403 = vpop.f32.mrb[0].mxu0
    %v1404 = vadd.f32 %v902, %v1403
    %v1405 = vpop.f32.mrb[0].mxu0
    %1406 = vmatprep.mubr.bf16.mxu0 %v1227
    %1407 = vmatmul.mubr.bf16.gmra.mrb[0].mxu0 %v1226
    %v1408 = vpop.f32.mrb[0].mxu0
    %v1409 = vadd.f32 %v907, %v1408
    %v1410 = vpop.f32.mrb[0].mxu0
    %v1411 = vpop.f32.mrb[0].mxu0
    %v1412 = vadd.f32 %v912, %v1411
    %v1413 = vpop.f32.mrb[0].mxu0
    %1414 = vmatprep.mubr.bf16.mxu0 %v1231
    %1415 = vmatmul.mubr.bf16.gmra.mrb[0].mxu0 %v1230
    %v1416 = vpop.f32.mrb[0].mxu0
    %v1417 = vadd.f32 %v917, %v1416
    %v1418 = vpop.f32.mrb[0].mxu0
    %v1419 = vpop.f32.mrb[0].mxu0
    %v1420 = vadd.f32 %v922, %v1419
    %v1421 = vpop.f32.mrb[0].mxu0
    %1422 = vmatprep.mubr.bf16.mxu0 %v1235
    %1423 = vmatmul.mubr.bf16.gmra.mrb[0].mxu0 %v1234
    %v1424 = vpop.f32.mrb[0].mxu0
    %v1425 = vadd.f32 %v927, %v1424
    %v1426 = vpop.f32.mrb[0].mxu0
    %v1427 = vpop.f32.mrb[0].mxu0
    %v1428 = vadd.f32 %v932, %v1427
    %v1429 = vpop.f32.mrb[0].mxu0
    %1430 = vmatprep.mubr.bf16.mxu0 %v1239
    %1431 = vmatmul.mubr.bf16.gmra.mrb[0].mxu0 %v1238
    %v1432 = vpop.f32.mrb[0].mxu0
    %v1433 = vadd.f32 %v937, %v1432
    %v1434 = vpop.f32.mrb[0].mxu0
    %v1435 = vpop.f32.mrb[0].mxu0
    %v1436 = vadd.f32 %v942, %v1435
    %v1437 = vpop.f32.mrb[0].mxu0
    %1438 = vmatprep.mubr.bf16.mxu0 %v1243
    %1439 = vmatmul.mubr.bf16.gmra.mrb[0].mxu0 %v1242
    %v1440 = vpop.f32.mrb[0].mxu0
    %v1441 = vadd.f32 %v947, %v1440
    %v1442 = vpop.f32.mrb[0].mxu0
    %v1443 = vpop.f32.mrb[0].mxu0
    %v1444 = vadd.f32 %v952, %v1443
    %v1445 = vpop.f32.mrb[0].mxu0
    %1446 = vmatprep.mubr.bf16.mxu0 %v1247
    %1447 = vmatmul.mubr.bf16.gmra.mrb[0].mxu0 %v1246
    %v1448 = vpop.f32.mrb[0].mxu0
    %v1449 = vadd.f32 %v957, %v1448
    %v1450 = vpop.f32.mrb[0].mxu0
    %v1451 = vpop.f32.mrb[0].mxu0
    %v1452 = vadd.f32 %v962, %v1451
    %v1453 = vpop.f32.mrb[0].mxu0
    %1454 = vmatprep.mubr.bf16.mxu0 %v1251
    %1455 = vmatmul.mubr.bf16.gmra.mrb[0].mxu0 %v1250
    %v1456 = vpop.f32.mrb[0].mxu0
    %v1457 = vadd.f32 %v967, %v1456
    %v1458 = vpop.f32.mrb[0].mxu0
    %v1459 = vpop.f32.mrb[0].mxu0
    %v1460 = vadd.f32 %v972, %v1459
    %v1461 = vpop.f32.mrb[0].mxu0
    %1462 = vmatprep.mubr.bf16.mxu0 %v1255
    %1463 = vmatmul.mubr.bf16.gmra.mrb[0].mxu0 %v1254
    %v1464 = vpop.f32.mrb[0].mxu0
    %v1465 = vadd.f32 %v977, %v1464
    %v1466 = vpop.f32.mrb[0].mxu0
    %v1467 = vpop.f32.mrb[0].mxu0
    %v1468 = vadd.f32 %v982, %v1467
    %v1469 = vpop.f32.mrb[0].mxu0
    %1470 = vmatprep.mubr.bf16.mxu0 %v1259
    %1471 = vmatmul.mubr.bf16.gmra.mrb[0].mxu0 %v1258
    %v1472 = vpop.f32.mrb[0].mxu0
    %v1473 = vadd.f32 %v987, %v1472
    %v1474 = vpop.f32.mrb[0].mxu0
    %v1475 = vpop.f32.mrb[0].mxu0
    %v1476 = vadd.f32 %v992, %v1475
    %v1477 = vpop.f32.mrb[0].mxu0
    %1478 = vmatprep.mubr.bf16.mxu0 %v1263
    %1479 = vmatmul.mubr.bf16.gmra.mrb[0].mxu0 %v1262
    %v1480 = vpop.f32.mrb[0].mxu0
    %v1481 = vadd.f32 %v997, %v1480
    %v1482 = vpop.f32.mrb[0].mxu0
    %v1483 = vpop.f32.mrb[0].mxu0
    %v1484 = vadd.f32 %v1002, %v1483
    %v1485 = vpop.f32.mrb[0].mxu0
    %1486 = vmatprep.mubr.bf16.mxu0 %v1267
    %1487 = vmatmul.mubr.bf16.gmra.mrb[0].mxu0 %v1266
    %v1488 = vpop.f32.mrb[0].mxu0
    %v1489 = vadd.f32 %v1007, %v1488
    %v1490 = vpop.f32.mrb[0].mxu0
    %v1491 = vpop.f32.mrb[0].mxu0
    %v1492 = vadd.f32 %v1012, %v1491
    %v1493 = vpop.f32.mrb[0].mxu0
    %1494 = vdwg.mxu0
    %1495 = vmatprep.subr.bf16.mxu0 0
    %1496 = vmatpush1.bf16.msra.mxu0 %v742
    %1497 = vmatprep.subr.bf16.mxu0 0
    %1498 = vmatpush1.bf16.msra.mxu0 %v743
    %1499 = vmatprep.subr.bf16.mxu0 0
    %1500 = vmatpush1.bf16.msra.mxu0 %v744
    %1501 = vmatprep.subr.bf16.mxu0 0
    %1502 = vmatpush1.bf16.msra.mxu0 %v745
    %1503 = vmatprep.subr.bf16.mxu0 0
    %1504 = vmatpush1.bf16.msra.mxu0 %v746
    %1505 = vmatprep.subr.bf16.mxu0 0
    %1506 = vmatpush1.bf16.msra.mxu0 %v747
    %1507 = vmatprep.subr.bf16.mxu0 0
    %1508 = vmatpush1.bf16.msra.mxu0 %v748
    %1509 = vmatprep.subr.bf16.mxu0 0
    %1510 = vmatpush1.bf16.msra.mxu0 %v749
    %1511 = vmatprep.subr.bf16.mxu0 0
    %1512 = vmatpush1.bf16.msra.mxu0 %v750
    %1513 = vmatprep.subr.bf16.mxu0 0
    %1514 = vmatpush1.bf16.msra.mxu0 %v751
    %1515 = vmatprep.subr.bf16.mxu0 0
    %1516 = vmatpush1.bf16.msra.mxu0 %v752
    %1517 = vmatprep.subr.bf16.mxu0 0
    %1518 = vmatpush1.bf16.msra.mxu0 %v753
    %1519 = vmatprep.subr.bf16.mxu0 0
    %1520 = vmatpush1.bf16.msra.mxu0 %v754
    %1521 = vmatprep.subr.bf16.mxu0 0
    %1522 = vmatpush1.bf16.msra.mxu0 %v755
    %1523 = vmatprep.subr.bf16.mxu0 0
    %1524 = vmatpush1.bf16.msra.mxu0 %v756
    %1525 = vmatprep.subr.bf16.mxu0 0
    %1526 = vmatpush1.bf16.msra.mxu0 %v757
    %1527 = vmatprep.mubr.bf16.mxu0 %v1209
    %1528 = vmatmul.mubr.bf16.gmra.mrb[0].mxu0 %v1208
    %v1529 = vpop.f32.mrb[0].mxu0
    %v1530 = vadd.f32 %v1369, %v1529
    %v1531 = vpop.f32.mrb[0].mxu0
    %v1532 = vpop.f32.mrb[0].mxu0
    %v1533 = vadd.f32 %v1372, %v1532
    %v1534 = vpop.f32.mrb[0].mxu0
    %1535 = vmatprep.mubr.bf16.mxu0 %v1213
    %1536 = vmatmul.mubr.bf16.gmra.mrb[0].mxu0 %v1212
    %v1537 = vpop.f32.mrb[0].mxu0
    %v1538 = vadd.f32 %v1377, %v1537
    %v1539 = vpop.f32.mrb[0].mxu0
    %v1540 = vpop.f32.mrb[0].mxu0
    %v1541 = vadd.f32 %v1380, %v1540
    %v1542 = vpop.f32.mrb[0].mxu0
    %1543 = vmatprep.mubr.bf16.mxu0 %v1217
    %1544 = vmatmul.mubr.bf16.gmra.mrb[0].mxu0 %v1216
    %v1545 = vpop.f32.mrb[0].mxu0
    %v1546 = vadd.f32 %v1385, %v1545
    %v1547 = vpop.f32.mrb[0].mxu0
    %v1548 = vpop.f32.mrb[0].mxu0
    %v1549 = vadd.f32 %v1388, %v1548
    %v1550 = vpop.f32.mrb[0].mxu0
    %1551 = vmatprep.mubr.bf16.mxu0 %v1221
    %1552 = vmatmul.mubr.bf16.gmra.mrb[0].mxu0 %v1220
    %v1553 = vpop.f32.mrb[0].mxu0
    %v1554 = vadd.f32 %v1393, %v1553
    %v1555 = vpop.f32.mrb[0].mxu0
    %v1556 = vpop.f32.mrb[0].mxu0
    %v1557 = vadd.f32 %v1396, %v1556
    %v1558 = vpop.f32.mrb[0].mxu0
    %1559 = vmatprep.mubr.bf16.mxu0 %v1225
    %1560 = vmatmul.mubr.bf16.gmra.mrb[0].mxu0 %v1224
    %v1561 = vpop.f32.mrb[0].mxu0
    %v1562 = vadd.f32 %v1401, %v1561
    %v1563 = vpop.f32.mrb[0].mxu0
    %v1564 = vpop.f32.mrb[0].mxu0
    %v1565 = vadd.f32 %v1404, %v1564
    %v1566 = vpop.f32.mrb[0].mxu0
    %1567 = vmatprep.mubr.bf16.mxu0 %v1229
    %1568 = vmatmul.mubr.bf16.gmra.mrb[0].mxu0 %v1228
    %v1569 = vpop.f32.mrb[0].mxu0
    %v1570 = vadd.f32 %v1409, %v1569
    %v1571 = vpop.f32.mrb[0].mxu0
    %v1572 = vpop.f32.mrb[0].mxu0
    %v1573 = vadd.f32 %v1412, %v1572
    %v1574 = vpop.f32.mrb[0].mxu0
    %1575 = vmatprep.mubr.bf16.mxu0 %v1233
    %1576 = vmatmul.mubr.bf16.gmra.mrb[0].mxu0 %v1232
    %v1577 = vpop.f32.mrb[0].mxu0
    %v1578 = vadd.f32 %v1417, %v1577
    %v1579 = vpop.f32.mrb[0].mxu0
    %v1580 = vpop.f32.mrb[0].mxu0
    %v1581 = vadd.f32 %v1420, %v1580
    %v1582 = vpop.f32.mrb[0].mxu0
    %1583 = vmatprep.mubr.bf16.mxu0 %v1237
    %1584 = vmatmul.mubr.bf16.gmra.mrb[0].mxu0 %v1236
    %v1585 = vpop.f32.mrb[0].mxu0
    %v1586 = vadd.f32 %v1425, %v1585
    %v1587 = vpop.f32.mrb[0].mxu0
    %v1588 = vpop.f32.mrb[0].mxu0
    %v1589 = vadd.f32 %v1428, %v1588
    %v1590 = vpop.f32.mrb[0].mxu0
    %1591 = vmatprep.mubr.bf16.mxu0 %v1241
    %1592 = vmatmul.mubr.bf16.gmra.mrb[0].mxu0 %v1240
    %v1593 = vpop.f32.mrb[0].mxu0
    %v1594 = vadd.f32 %v1433, %v1593
    %v1595 = vpop.f32.mrb[0].mxu0
    %v1596 = vpop.f32.mrb[0].mxu0
    %v1597 = vadd.f32 %v1436, %v1596
    %v1598 = vpop.f32.mrb[0].mxu0
    %1599 = vmatprep.mubr.bf16.mxu0 %v1245
    %1600 = vmatmul.mubr.bf16.gmra.mrb[0].mxu0 %v1244
    %v1601 = vpop.f32.mrb[0].mxu0
    %v1602 = vadd.f32 %v1441, %v1601
    %v1603 = vpop.f32.mrb[0].mxu0
    %v1604 = vpop.f32.mrb[0].mxu0
    %v1605 = vadd.f32 %v1444, %v1604
    %v1606 = vpop.f32.mrb[0].mxu0
    %1607 = vmatprep.mubr.bf16.mxu0 %v1249
    %1608 = vmatmul.mubr.bf16.gmra.mrb[0].mxu0 %v1248
    %v1609 = vpop.f32.mrb[0].mxu0
    %v1610 = vadd.f32 %v1449, %v1609
    %v1611 = vpop.f32.mrb[0].mxu0
    %v1612 = vpop.f32.mrb[0].mxu0
    %v1613 = vadd.f32 %v1452, %v1612
    %v1614 = vpop.f32.mrb[0].mxu0
    %1615 = vmatprep.mubr.bf16.mxu0 %v1253
    %1616 = vmatmul.mubr.bf16.gmra.mrb[0].mxu0 %v1252
    %v1617 = vpop.f32.mrb[0].mxu0
    %v1618 = vadd.f32 %v1457, %v1617
    %v1619 = vpop.f32.mrb[0].mxu0
    %v1620 = vpop.f32.mrb[0].mxu0
    %v1621 = vadd.f32 %v1460, %v1620
    %v1622 = vpop.f32.mrb[0].mxu0
    %1623 = vmatprep.mubr.bf16.mxu0 %v1257
    %1624 = vmatmul.mubr.bf16.gmra.mrb[0].mxu0 %v1256
    %v1625 = vpop.f32.mrb[0].mxu0
    %v1626 = vadd.f32 %v1465, %v1625
    %v1627 = vpop.f32.mrb[0].mxu0
    %v1628 = vpop.f32.mrb[0].mxu0
    %v1629 = vadd.f32 %v1468, %v1628
    %v1630 = vpop.f32.mrb[0].mxu0
    %1631 = vmatprep.mubr.bf16.mxu0 %v1261
    %1632 = vmatmul.mubr.bf16.gmra.mrb[0].mxu0 %v1260
    %v1633 = vpop.f32.mrb[0].mxu0
    %v1634 = vadd.f32 %v1473, %v1633
    %v1635 = vpop.f32.mrb[0].mxu0
    %v1636 = vpop.f32.mrb[0].mxu0
    %v1637 = vadd.f32 %v1476, %v1636
    %v1638 = vpop.f32.mrb[0].mxu0
    %1639 = vmatprep.mubr.bf16.mxu0 %v1265
    %1640 = vmatmul.mubr.bf16.gmra.mrb[0].mxu0 %v1264
    %v1641 = vpop.f32.mrb[0].mxu0
    %v1642 = vadd.f32 %v1481, %v1641
    %v1643 = vpop.f32.mrb[0].mxu0
    %v1644 = vpop.f32.mrb[0].mxu0
    %v1645 = vadd.f32 %v1484, %v1644
    %v1646 = vpop.f32.mrb[0].mxu0
    %1647 = vmatprep.mubr.bf16.mxu0 %v1269
    %1648 = vmatmul.mubr.bf16.gmra.mrb[0].mxu0 %v1268
    %v1649 = vpop.f32.mrb[0].mxu0
    %v1650 = vadd.f32 %v1489, %v1649
    %v1651 = vpop.f32.mrb[0].mxu0
    %v1652 = vpop.f32.mrb[0].mxu0
    %v1653 = vadd.f32 %v1492, %v1652
    %v1654 = vpop.f32.mrb[0].mxu0
    %1655 = vdwg.mxu0
    %v1656 = vmax.f32 %v1530, 0.0
    %v1657 = vmax.f32 %v1533, 0.0
    %v1658 = vmax.f32 %v1538, 0.0
    %v1659 = vmax.f32 %v1541, 0.0
    %v1660 = vmax.f32 %v1546, 0.0
    %v1661 = vmax.f32 %v1549, 0.0
    %v1662 = vmax.f32 %v1554, 0.0
    %v1663 = vmax.f32 %v1557, 0.0
    %v1664 = vmax.f32 %v1562, 0.0
    %v1665 = vmax.f32 %v1565, 0.0
    %v1666 = vmax.f32 %v1570, 0.0
    %v1667 = vmax.f32 %v1573, 0.0
    %v1668 = vmax.f32 %v1578, 0.0
    %v1669 = vmax.f32 %v1581, 0.0
    %v1670 = vmax.f32 %v1586, 0.0
    %v1671 = vmax.f32 %v1589, 0.0
    %v1672 = vmax.f32 %v1594, 0.0
    %v1673 = vmax.f32 %v1597, 0.0
    %v1674 = vmax.f32 %v1602, 0.0
    %v1675 = vmax.f32 %v1605, 0.0
    %v1676 = vmax.f32 %v1610, 0.0
    %v1677 = vmax.f32 %v1613, 0.0
    %v1678 = vmax.f32 %v1618, 0.0
    %v1679 = vmax.f32 %v1621, 0.0
    %v1680 = vmax.f32 %v1626, 0.0
    %v1681 = vmax.f32 %v1629, 0.0
    %v1682 = vmax.f32 %v1634, 0.0
    %v1683 = vmax.f32 %v1637, 0.0
    %v1684 = vmax.f32 %v1642, 0.0
    %v1685 = vmax.f32 %v1645, 0.0
    %v1686 = vmax.f32 %v1650, 0.0
    %v1687 = vmax.f32 %v1653, 0.0
    %v1688 = vld [vmem:[%s4] sm:$0xff]
    %v1689 = vld [vmem:[%s4 + $0x8] sm:$0xff]
    %v1690 = vld [vmem:[%s4 + $0x10] sm:$0xff]
    %v1691 = vld [vmem:[%s4 + $0x18] sm:$0xff]
    %v1692 = vld [vmem:[%s4 + $0x20] sm:$0xff]
    %v1693 = vld [vmem:[%s4 + $0x28] sm:$0xff]
    %v1694 = vld [vmem:[%s4 + $0x30] sm:$0xff]
    %v1695 = vld [vmem:[%s4 + $0x38] sm:$0xff]
    %v1696 = vld [vmem:[%s4 + $0x40] sm:$0xff]
    %v1697 = vld [vmem:[%s4 + $0x48] sm:$0xff]
    %v1698 = vld [vmem:[%s4 + $0x50] sm:$0xff]
    %v1699 = vld [vmem:[%s4 + $0x58] sm:$0xff]
    %v1700 = vld [vmem:[%s4 + $0x60] sm:$0xff]
    %v1701 = vld [vmem:[%s4 + $0x68] sm:$0xff]
    %v1702 = vld [vmem:[%s4 + $0x70] sm:$0xff]
    %v1703 = vld [vmem:[%s4 + $0x78] sm:$0xff]
    %v1704 = vld [vmem:[%s4 + $0x80] sm:$0xff]
    %v1705 = vld [vmem:[%s4 + $0x88] sm:$0xff]
    %v1706 = vld [vmem:[%s4 + $0x90] sm:$0xff]
    %v1707 = vld [vmem:[%s4 + $0x98] sm:$0xff]
    %v1708 = vld [vmem:[%s4 + $0xa0] sm:$0xff]
    %v1709 = vld [vmem:[%s4 + $0xa8] sm:$0xff]
    %v1710 = vld [vmem:[%s4 + $0xb0] sm:$0xff]
    %v1711 = vld [vmem:[%s4 + $0xb8] sm:$0xff]
    %v1712 = vld [vmem:[%s4 + $0xc0] sm:$0xff]
    %v1713 = vld [vmem:[%s4 + $0xc8] sm:$0xff]
    %v1714 = vld [vmem:[%s4 + $0xd0] sm:$0xff]
    %v1715 = vld [vmem:[%s4 + $0xd8] sm:$0xff]
    %v1716 = vld [vmem:[%s4 + $0xe0] sm:$0xff]
    %v1717 = vld [vmem:[%s4 + $0xe8] sm:$0xff]
    %v1718 = vld [vmem:[%s4 + $0xf0] sm:$0xff]
    %v1719 = vld [vmem:[%s4 + $0xf8] sm:$0xff]
    %1721 = vset.pattern.permute.xlu0 0
    %1722 = vperm.xlu0 %1721, %v1688
    %v1723 = vpop.permute.xlu0 %1722
    %1726 = vset.pattern.permute.xlu0 0
    %1727 = vperm.xlu0 %1726, %v1689
    %v1728 = vpop.permute.xlu0 %1727
    %1731 = vset.pattern.permute.xlu0 0
    %1732 = vperm.xlu0 %1731, %v1690
    %v1733 = vpop.permute.xlu0 %1732
    %1736 = vset.pattern.permute.xlu0 0
    %1737 = vperm.xlu0 %1736, %v1691
    %v1738 = vpop.permute.xlu0 %1737
    %1741 = vset.pattern.permute.xlu0 0
    %1742 = vperm.xlu0 %1741, %v1692
    %v1743 = vpop.permute.xlu0 %1742
    %1746 = vset.pattern.permute.xlu0 0
    %1747 = vperm.xlu0 %1746, %v1693
    %v1748 = vpop.permute.xlu0 %1747
    %1751 = vset.pattern.permute.xlu0 0
    %1752 = vperm.xlu0 %1751, %v1694
    %v1753 = vpop.permute.xlu0 %1752
    %1756 = vset.pattern.permute.xlu0 0
    %1757 = vperm.xlu0 %1756, %v1695
    %v1758 = vpop.permute.xlu0 %1757
    %1761 = vset.pattern.permute.xlu0 0
    %1762 = vperm.xlu0 %1761, %v1696
    %v1763 = vpop.permute.xlu0 %1762
    %1766 = vset.pattern.permute.xlu0 0
    %1767 = vperm.xlu0 %1766, %v1697
    %v1768 = vpop.permute.xlu0 %1767
    %1771 = vset.pattern.permute.xlu0 0
    %1772 = vperm.xlu0 %1771, %v1698
    %v1773 = vpop.permute.xlu0 %1772
    %1776 = vset.pattern.permute.xlu0 0
    %1777 = vperm.xlu0 %1776, %v1699
    %v1778 = vpop.permute.xlu0 %1777
    %1781 = vset.pattern.permute.xlu0 0
    %1782 = vperm.xlu0 %1781, %v1700
    %v1783 = vpop.permute.xlu0 %1782
    %1786 = vset.pattern.permute.xlu0 0
    %1787 = vperm.xlu0 %1786, %v1701
    %v1788 = vpop.permute.xlu0 %1787
    %1791 = vset.pattern.permute.xlu0 0
    %1792 = vperm.xlu0 %1791, %v1702
    %v1793 = vpop.permute.xlu0 %1792
    %1796 = vset.pattern.permute.xlu0 0
    %1797 = vperm.xlu0 %1796, %v1703
    %v1798 = vpop.permute.xlu0 %1797
    %1801 = vset.pattern.permute.xlu0 0
    %1802 = vperm.xlu0 %1801, %v1704
    %v1803 = vpop.permute.xlu0 %1802
    %1806 = vset.pattern.permute.xlu0 0
    %1807 = vperm.xlu0 %1806, %v1705
    %v1808 = vpop.permute.xlu0 %1807
    %1811 = vset.pattern.permute.xlu0 0
    %1812 = vperm.xlu0 %1811, %v1706
    %v1813 = vpop.permute.xlu0 %1812
    %1816 = vset.pattern.permute.xlu0 0
    %1817 = vperm.xlu0 %1816, %v1707
    %v1818 = vpop.permute.xlu0 %1817
    %1821 = vset.pattern.permute.xlu0 0
    %1822 = vperm.xlu0 %1821, %v1708
    %v1823 = vpop.permute.xlu0 %1822
    %1826 = vset.pattern.permute.xlu0 0
    %1827 = vperm.xlu0 %1826, %v1709
    %v1828 = vpop.permute.xlu0 %1827
    %1831 = vset.pattern.permute.xlu0 0
    %1832 = vperm.xlu0 %1831, %v1710
    %v1833 = vpop.permute.xlu0 %1832
    %1836 = vset.pattern.permute.xlu0 0
    %1837 = vperm.xlu0 %1836, %v1711
    %v1838 = vpop.permute.xlu0 %1837
    %1841 = vset.pattern.permute.xlu0 0
    %1842 = vperm.xlu0 %1841, %v1712
    %v1843 = vpop.permute.xlu0 %1842
    %1846 = vset.pattern.permute.xlu0 0
    %1847 = vperm.xlu0 %1846, %v1713
    %v1848 = vpop.permute.xlu0 %1847
    %1851 = vset.pattern.permute.xlu0 0
    %1852 = vperm.xlu0 %1851, %v1714
    %v1853 = vpop.permute.xlu0 %1852
    %1856 = vset.pattern.permute.xlu0 0
    %1857 = vperm.xlu0 %1856, %v1715
    %v1858 = vpop.permute.xlu0 %1857
    %1861 = vset.pattern.permute.xlu0 0
    %1862 = vperm.xlu0 %1861, %v1716
    %v1863 = vpop.permute.xlu0 %1862
    %1866 = vset.pattern.permute.xlu0 0
    %1867 = vperm.xlu0 %1866, %v1717
    %v1868 = vpop.permute.xlu0 %1867
    %1871 = vset.pattern.permute.xlu0 0
    %1872 = vperm.xlu0 %1871, %v1718
    %v1873 = vpop.permute.xlu0 %1872
    %1876 = vset.pattern.permute.xlu0 0
    %1877 = vperm.xlu0 %1876, %v1719
    %v1878 = vpop.permute.xlu0 %1877
    %v1880 = vmul.f32 %v1656, %v1723
    %v1881 = vmul.f32 %v1657, %v1728
    %v1882 = vmul.f32 %v1658, %v1733
    %v1883 = vmul.f32 %v1659, %v1738
    %v1884 = vmul.f32 %v1660, %v1743
    %v1885 = vmul.f32 %v1661, %v1748
    %v1886 = vmul.f32 %v1662, %v1753
    %v1887 = vmul.f32 %v1663, %v1758
    %v1888 = vmul.f32 %v1664, %v1763
    %v1889 = vmul.f32 %v1665, %v1768
    %v1890 = vmul.f32 %v1666, %v1773
    %v1891 = vmul.f32 %v1667, %v1778
    %v1892 = vmul.f32 %v1668, %v1783
    %v1893 = vmul.f32 %v1669, %v1788
    %v1894 = vmul.f32 %v1670, %v1793
    %v1895 = vmul.f32 %v1671, %v1798
    %v1896 = vmul.f32 %v1672, %v1803
    %v1897 = vmul.f32 %v1673, %v1808
    %v1898 = vmul.f32 %v1674, %v1813
    %v1899 = vmul.f32 %v1675, %v1818
    %v1900 = vmul.f32 %v1676, %v1823
    %v1901 = vmul.f32 %v1677, %v1828
    %v1902 = vmul.f32 %v1678, %v1833
    %v1903 = vmul.f32 %v1679, %v1838
    %v1904 = vmul.f32 %v1680, %v1843
    %v1905 = vmul.f32 %v1681, %v1848
    %v1906 = vmul.f32 %v1682, %v1853
    %v1907 = vmul.f32 %v1683, %v1858
    %v1908 = vmul.f32 %v1684, %v1863
    %v1909 = vmul.f32 %v1685, %v1868
    %v1910 = vmul.f32 %v1686, %v1873
    %v1911 = vmul.f32 %v1687, %v1878
    %v1912 = vadd.f32 %v1880, %v1881
    %v1913 = vadd.f32 %v1912, %v1882
    %v1914 = vadd.f32 %v1913, %v1883
    %v1915 = vadd.f32 %v1914, %v1884
    %v1916 = vadd.f32 %v1915, %v1885
    %v1917 = vadd.f32 %v1916, %v1886
    %v1918 = vadd.f32 %v1917, %v1887
    %v1919 = vadd.f32 %v1918, %v1888
    %v1920 = vadd.f32 %v1919, %v1889
    %v1921 = vadd.f32 %v1920, %v1890
    %v1922 = vadd.f32 %v1921, %v1891
    %v1923 = vadd.f32 %v1922, %v1892
    %v1924 = vadd.f32 %v1923, %v1893
    %v1925 = vadd.f32 %v1924, %v1894
    %v1926 = vadd.f32 %v1925, %v1895
    %v1927 = vadd.f32 %v1926, %v1896
    %v1928 = vadd.f32 %v1927, %v1897
    %v1929 = vadd.f32 %v1928, %v1898
    %v1930 = vadd.f32 %v1929, %v1899
    %v1931 = vadd.f32 %v1930, %v1900
    %v1932 = vadd.f32 %v1931, %v1901
    %v1933 = vadd.f32 %v1932, %v1902
    %v1934 = vadd.f32 %v1933, %v1903
    %v1935 = vadd.f32 %v1934, %v1904
    %v1936 = vadd.f32 %v1935, %v1905
    %v1937 = vadd.f32 %v1936, %v1906
    %v1938 = vadd.f32 %v1937, %v1907
    %v1939 = vadd.f32 %v1938, %v1908
    %v1940 = vadd.f32 %v1939, %v1909
    %v1941 = vadd.f32 %v1940, %v1910
    %v1942 = vadd.f32 %v1941, %v1911
    %v1943 = vrot.slane %v1942, 4
    %v1944 = vadd.f32 %v1942, %v1943
    %v1945 = vrot.slane %v1944, 2
    %v1946 = vadd.f32 %v1944, %v1945
    %v1947 = vrot.slane %v1946, 1
    %v1948 = vadd.f32 %v1946, %v1947
    %s1949 = sld [smem:[#allocation2]]
    %v1950 = vstv %s1949
    %v1951 = vadd.f32 %v1948, %v1950
    %1952 = vst [vmem:[#allocation3] sm:$0x1] %v1951
    // Predicated region
    $region26: #{tpu_custom_call.1} parent=1 // pred_check
      _
    $region27: #{tpu_custom_call.1} parent=1 // pred_check_branch
      %1954 = sbr.rel (0) target = $region29
    $region28: #{tpu_custom_call.1} parent=1 // pred_region
      %s1956 = ssub.s32 16, 16
      %1957 = vsyncadd [#allocation4], %s1956
      %s1959 = sshll.u32 [#allocation3], 4
      %s1960 = int_to_ptr.vmem [resolvable:$true] %s1959
      %1962 = dma.vmem_to_hbm [thread:$0]  %s1960, 16, %s6, [#allocation4]
    $region29: #{tpu_custom_call.1} parent=1 // pred_fallthru
      _
    // Predicated region
    $region30: #{tpu_custom_call.1} parent=1 // pred_check
      _
    $region31: #{tpu_custom_call.1} parent=1 // pred_check_branch
      %1964 = sbr.rel (0) target = $region33
    $region32: #{tpu_custom_call.1} parent=1 // pred_region
      %1965 = dma.done [#allocation4], 16
    $region33: #{tpu_custom_call.1} parent=1 // pred_fallthru
      _
    %1966 = vsyncpa [#allocation4], 1

</llo_original>
